<compile_context>
chip_gen: v7x
topology: tpu7x:2x2x1
jax: 0.10.0
libtpu: 0.0.40
codegen_flags: <defaults>
</compile_context>

<pallas_src>
import jax
import jax.numpy as jnp
from jax.experimental import pallas as pl
from jax.experimental.pallas import tpu as pltpu


def conv1x1_kernel(w_ref, x_ref, o_ref):
    # w_ref: (TM, C_in)    bf16  -- one C_out block of the weight
    # x_ref: (1, C_in, HW) f32   -- whole activation for this batch element
    # o_ref: (1, TM, HW)   f32
    x_bf16 = x_ref[0].astype(jnp.bfloat16)   # on-chip cast; HBM read stays f32
    o_ref[0] = jnp.dot(w_ref[...], x_bf16, preferred_element_type=jnp.float32)


@jax.jit
def conv2d_1x1(x_nchw, weight_oi):
    """1x1 stride-1 conv, no bias.

    x_nchw:    (N, C_in, H, W)  float32
    weight_oi: (C_out, C_in)    float32   (torch conv weight squeezed)
    returns:   (N, C_out, H, W) float32
    """
    N, C_in, H, W = x_nchw.shape
    C_out = weight_oi.shape[0]
    HW = H * W

    # Free reshape (no transpose, no data movement).
    x3 = x_nchw.reshape(N, C_in, HW)
    # One-time weight prep: bf16 halves the dominant HBM transfer.
    w_bf16 = weight_oi.astype(jnp.bfloat16)

    # Split C_out into (up to) two blocks with a row count that is a multiple
    # of 8 (sublane constraint).  The last block may be partial; Pallas masks
    # the out-of-bounds output rows on writeback, so correctness is preserved.
    if C_out >= 16:
        tm = (-(-C_out // 2) + 7) // 8 * 8   # ceil(C_out / 2), rounded up to 8
    else:
        tm = C_out
    n_co = pl.cdiv(C_out, tm)

    cost = pl.CostEstimate(
        flops=2 * N * C_out * C_in * HW,
        transcendentals=0,
        bytes_accessed=x3.size * 4 + w_bf16.size * 2 + N * C_out * HW * 4,
    )

    y3 = pl.pallas_call(
        conv1x1_kernel,
        out_shape=jax.ShapeDtypeStruct((N, C_out, HW), jnp.float32),
        grid=(N, n_co),
        in_specs=[
            # Weight block: varies along the (innermost) C_out grid axis.
            pl.BlockSpec((tm, C_in), lambda n, i: (i, 0)),
            # Activation: same block index across the C_out axis -> fetched once.
            pl.BlockSpec((1, C_in, HW), lambda n, i: (n, 0, 0)),
        ],
        out_specs=pl.BlockSpec((1, tm, HW), lambda n, i: (n, i, 0)),
        compiler_params=pltpu.CompilerParams(
            dimension_semantics=("parallel", "parallel"),
        ),
        cost_estimate=cost,
    )(w_bf16, x3)

    # Free reshape back to NCHW.
    return y3.reshape(N, C_out, H, W)


if __name__ == "__main__":
    key = jax.random.PRNGKey(0)
    k_x, k_w = jax.random.split(key)

    # Shapes implied by the module: Conv2d(2064, 344, 1x1) on (1, 2064, 7, 7).
    N, C_in, C_out, H, W = 1, 2064, 344, 7, 7

    x = jax.random.normal(k_x, (N, C_in, H, W), dtype=jnp.float32)
    weight = jax.random.normal(k_w, (C_out, C_in), dtype=jnp.float32) * (1.0 / (C_in ** 0.5))

    y = conv2d_1x1(x, weight)
    y = jax.block_until_ready(y)

    # Reference: same bf16-rounded operands, f32 accumulation at HIGHEST
    # precision (mirrors the kernel's bf16-MXU / f32-accumulator path).
    x_r = x.astype(jnp.bfloat16).astype(jnp.float32)
    w_r = weight.astype(jnp.bfloat16).astype(jnp.float32)
    y_ref = jnp.einsum("nchw,oc->nohw", x_r, w_r,
                       precision=jax.lax.Precision.HIGHEST)

    assert y.shape == (N, C_out, H, W)
    assert jnp.allclose(y, y_ref, atol=1e-2, rtol=1e-2), float(
        jnp.max(jnp.abs(y - y_ref)))

    print("KERNEL_OK")
</pallas_src>

<mosaic_0001>
module attributes {stable_mosaic.version = 11 : i64} {
  func.func @conv1x1_kernel(%arg0: i32, %arg1: i32, %arg2: memref<176x2064xbf16, #tpu.memory_space<vmem>>, %arg3: memref<1x2064x49xf32, #tpu.memory_space<vmem>>, %arg4: memref<1x176x49xf32, #tpu.memory_space<vmem>>) attributes {dimension_semantics = [#tpu.dimension_semantics<parallel>, #tpu.dimension_semantics<parallel>], iteration_bounds = array<i64: 1, 2>, scalar_prefetch = 0 : i64, scratch_operands = 0 : i64, tpu.core_type = #tpu.core_type<tc>, window_params = [{transform_indices = @transform_0, window_bounds = array<i64: 176, 2064>}, {transform_indices = @transform_1, window_bounds = array<i64: 1, 2064, 49>}, {transform_indices = @transform_2, window_bounds = array<i64: 1, 176, 49>}]} {
    %c0 = arith.constant 0 : index
    %c0_0 = arith.constant 0 : index
    %c0_1 = arith.constant 0 : index
    %0 = vector.load %arg3[%c0, %c0_0, %c0_1] : memref<1x2064x49xf32, #tpu.memory_space<vmem>>, vector<1x2064x49xf32>
    %1 = vector.shape_cast %0 : vector<1x2064x49xf32> to vector<2064x49xf32>
    %2 = arith.truncf %1 : vector<2064x49xf32> to vector<2064x49xbf16>
    %c0_2 = arith.constant 0 : index
    %c0_3 = arith.constant 0 : index
    %3 = vector.load %arg2[%c0_2, %c0_3] : memref<176x2064xbf16, #tpu.memory_space<vmem>>, vector<176x2064xbf16>
    %cst = arith.constant dense<0.000000e+00> : vector<176x49xf32>
    %4 = tpu.matmul %3, %2, %cst {dimension_numbers = #tpu.dot_dimension_numbers<[1], [0], [0], [1], [0, 0, 1, 1], [], []>} : vector<176x2064xbf16>, vector<2064x49xbf16>, vector<176x49xf32> -> vector<176x49xf32>
    %c0_4 = arith.constant 0 : index
    %c0_5 = arith.constant 0 : index
    %c0_6 = arith.constant 0 : index
    %5 = vector.load %arg4[%c0_4, %c0_5, %c0_6] : memref<1x176x49xf32, #tpu.memory_space<vmem>>, vector<1x176x49xf32>
    %6 = vector.shape_cast %5 : vector<1x176x49xf32> to vector<176x49xf32>
    %7 = vector.shape_cast %4 : vector<176x49xf32> to vector<1x176x49xf32>
    tpu.vector_store %arg4[%c0_4, %c0_5, %c0_6], %7 {strides = array<i32>} : memref<1x176x49xf32, #tpu.memory_space<vmem>>, vector<1x176x49xf32>,
    return
  }
  func.func @transform_0(%arg0: i32, %arg1: i32) -> (i32, i32) {
    %c0_i32 = arith.constant 0 : i32
    %c0_i32_0 = arith.constant 0 : i32
    return %arg1, %c0_i32 : i32, i32
  }
  func.func @transform_1(%arg0: i32, %arg1: i32) -> (i32, i32, i32) {
    %c0_i32 = arith.constant 0 : i32
    %c0_i32_0 = arith.constant 0 : i32
    %c0_i32_1 = arith.constant 0 : i32
    return %arg0, %c0_i32, %c0_i32_0 : i32, i32, i32
  }
  func.func @transform_2(%arg0: i32, %arg1: i32) -> (i32, i32, i32) {
    %c0_i32 = arith.constant 0 : i32
    %c0_i32_0 = arith.constant 0 : i32
    return %arg0, %arg1, %c0_i32 : i32, i32, i32
  }
}

</mosaic_0001>

<llo_original>
// kernel: conv2d_1x1.1
$region0: #{conv2d_1x1.1}
  #allocation0 [shape = 'u32[]', space=smem, size = 0x4, offset = 0x4, fixed_abs, tag = 'smem constant byte address 0x4 - core index']
  #allocation1 [shape = 'u32[144,128]{1,0:T(1,128)}', space=vmem, size = 0x12000, scoped, tag = 'internal scratch']
  %s0 = inlined_call_operand.vmem [shape: bf16[344,2064], index: 0, kind: input, shape index: {}]
  %s1 = inlined_call_operand.vmem [shape: f32[1,2064,49], index: 1, kind: input, shape index: {}]
  %s2 = inlined_call_operand.vmem [shape: f32[1,344,49], index: 2, kind: output, shape index: {}]
  %s3 = sld [smem:[#allocation0]]
  $region89: #{conv2d_1x1.1} parent=0
    _
  %s5 = ssub.s32 1, %s3
  %s6 = scalar_select 0, %s5, %s3
  $region1: #{conv2d_1x1.1} parent=0
    #allocation2 [shape = 'u8[180224]{0}', space=vmem, size = 0x2c000, scoped, tag = 'output window, operand 0']
    loop: start=0, step=1, limit=4
    $region2: #{conv2d_1x1.1} parent=1 // loop_pre_header
      _
    $region3: #{conv2d_1x1.1} parent=1 // loop_header
      %s8 = sphi 0, %s12
      %p9 = scmp.ge.s32.totalorder %s8, 4
      %s15 = sphi 0, %s27
      %s16 = sphi 0, %s23
      %s17 = sphi 0, %s15
      %s18 = sphi 0, %s16
      %s19 = sphi 0, %s17
      %s20 = sphi 0, %s18
      %s30 = sphi 0, %s32
      %s33 = sphi 0, %s30
      %s34 = sphi 0, %s33
      %s50 = sphi 0, %s34
      %s56 = sphi 0, %s58
      %s59 = sphi 0, %s56
      %s60 = sphi 0, %s59
      %s76 = sphi 0, %s60
      %s84 = sphi 0, %s86
      %s87 = sphi 0, %s84
      %s88 = sphi 0, %s87
      %s104 = sphi 0, %s88
    $region4: #{conv2d_1x1.1} parent=1 // loop_header_branch
      %11 = sbr.rel (%p9) target = $region8
    $region5: #{conv2d_1x1.1} parent=1 // loop_body
      %s13 = ssub.s32 %s8, 1
      %s14 = ssub.s32 %s8, 2
      %s21 = sadd.s32 1, %s16
      %p22 = scmp.ge.s32.totalorder %s21, 2
      %s23 = scalar_select %p22, 0, %s21
      %s24 = sadd.s32 1, %s15
      %s25 = scalar_select %p22, %s24, %s15
      %p26 = scmp.ge.s32.totalorder %s25, 1
      %s27 = scalar_select %p26, 0, %s25
      %s28 = ssub.s32 %s16, %s23
      %p29 = scmp.eq.s32.totalorder %s28, 0
      %s31 = sadd.s32 %s30, 1
      %s32 = scalar_select %p29, %s30, %s31
      %p35 = pneg %p29
      %p36 = scmp.eq.s32.totalorder %s8, 1
      %p37 = por %p35, %p36
      %p38 = scmp.ne.s32.totalorder %s30, %s33
      %p39 = scmp.eq.s32.totalorder %s8, 0
      %p40 = por %p38, %p39
      %p41 = scmp.ne.s32.totalorder %s30, %s33
      %p42 = scmp.eq.s32.totalorder %s13, 1
      %p43 = por %p41, %p42
      %p44 = scmp.ne.s32.totalorder %s33, %s34
      %p45 = scmp.eq.s32.totalorder %s13, 0
      %p46 = por %p44, %p45
      %p47 = scmp.ne.s32.totalorder %s33, %s34
      %p48 = scmp.eq.s32.totalorder %s14, 1
      %p49 = por %p47, %p48
      %p51 = scmp.ne.s32.totalorder %s34, %s50
      %p52 = scmp.eq.s32.totalorder %s14, 0
      %p53 = por %p51, %p52
      %s54 = ssub.s32 %s15, %s27
      %p55 = scmp.eq.s32.totalorder %s54, 0
      %s57 = sadd.s32 %s56, 1
      %s58 = scalar_select %p55, %s56, %s57
      %p61 = pneg %p55
      %p62 = scmp.eq.s32.totalorder %s8, 1
      %p63 = por %p61, %p62
      %p64 = scmp.ne.s32.totalorder %s56, %s59
      %p65 = scmp.eq.s32.totalorder %s8, 0
      %p66 = por %p64, %p65
      %p67 = scmp.ne.s32.totalorder %s56, %s59
      %p68 = scmp.eq.s32.totalorder %s13, 1
      %p69 = por %p67, %p68
      %p70 = scmp.ne.s32.totalorder %s59, %s60
      %p71 = scmp.eq.s32.totalorder %s13, 0
      %p72 = por %p70, %p71
      %p73 = scmp.ne.s32.totalorder %s59, %s60
      %p74 = scmp.eq.s32.totalorder %s14, 1
      %p75 = por %p73, %p74
      %p77 = scmp.ne.s32.totalorder %s60, %s76
      %p78 = scmp.eq.s32.totalorder %s14, 0
      %p79 = por %p77, %p78
      %s80 = ssub.s32 %s15, %s27
      %s81 = ssub.s32 %s16, %s23
      %s82 = sor.u32 %s80, %s81
      %p83 = scmp.eq.s32.totalorder %s82, 0
      %s85 = sadd.s32 %s84, 1
      %s86 = scalar_select %p83, %s84, %s85
      %p89 = pneg %p83
      %p90 = scmp.eq.s32.totalorder %s8, 1
      %p91 = por %p89, %p90
      %p92 = scmp.ne.s32.totalorder %s84, %s87
      %p93 = scmp.eq.s32.totalorder %s8, 0
      %p94 = por %p92, %p93
      %p95 = scmp.ne.s32.totalorder %s84, %s87
      %p96 = scmp.eq.s32.totalorder %s13, 1
      %p97 = por %p95, %p96
      %p98 = scmp.ne.s32.totalorder %s87, %s88
      %p99 = scmp.eq.s32.totalorder %s13, 0
      %p100 = por %p98, %p99
      %p101 = scmp.ne.s32.totalorder %s87, %s88
      %p102 = scmp.eq.s32.totalorder %s14, 1
      %p103 = por %p101, %p102
      %p105 = scmp.ne.s32.totalorder %s88, %s104
      %p106 = scmp.eq.s32.totalorder %s14, 0
      %p107 = por %p105, %p106
      %p108 = scmp.le.s32.totalorder 1, %s8
      %p109 = scmp.lt.s32.totalorder %s8, 3
      %p110 = pnand %p108, %p109
      %p111 = pneg %p110
      // Predicated region
      $region9: #{conv2d_1x1.1} parent=5 // pred_check
        _
      $region10: #{conv2d_1x1.1} parent=5 // pred_check_branch
        %113 = sbr.rel (%p110) target = $region12
      $region11: #{conv2d_1x1.1} parent=5 // pred_region
        %s114 = ssub.s32 %s8, 1
        // Predicated region
        $region13: #{conv2d_1x1.1} parent=11 // pred_check
          %p115 = pneg %p72
        $region14: #{conv2d_1x1.1} parent=11 // pred_check_branch
          %117 = sbr.rel (%p115) target = $region16
        $region15: #{conv2d_1x1.1} parent=11 // pred_region
          %p118 = scmp.lt.s32.totalorder %s17, 0
          %s119 = scalar_select %p118, %s17, 0
          %s120 = smul.addr %s119, 258
          %s121 = smul.addr %s120, 8
          %s122 = scalar_lea.vmem %s1, %s121
        $region16: #{conv2d_1x1.1} parent=11 // pred_fallthru
          _
      $region12: #{conv2d_1x1.1} parent=5 // pred_fallthru
        _
      %p123 = scmp.lt.s32.totalorder %s8, 2
      // Predicated region
      $region17: #{conv2d_1x1.1} parent=5 // pred_check
        %p124 = pneg %p123
      $region18: #{conv2d_1x1.1} parent=5 // pred_check_branch
        %126 = sbr.rel (%p124) target = $region20
      $region19: #{conv2d_1x1.1} parent=5 // pred_region
        // Predicated region
        $region21: #{conv2d_1x1.1} parent=19 // pred_check
          %p127 = pneg %p40
        $region22: #{conv2d_1x1.1} parent=19 // pred_check_branch
          %129 = sbr.rel (%p127) target = $region24
        $region23: #{conv2d_1x1.1} parent=19 // pred_region
          %s130 = smul.u32 22, %s16
          %s131 = ssub.s32 43, %s130
          %p132 = scmp.lt.s32.totalorder %s131, 22
          %s133 = scalar_select %p132, %s131, 22
          %s134 = smul.u32 64, %s133
          %s135 = smul.u32 %s134, 17
          %p136 = scmp.lt.s32.totalorder %s130, 42
          %s137 = scalar_select %p136, %s130, 42
          %s138 = smul.addr %s137, 17
          %s139 = smul.addr %s138, 4
          %s140 = scalar_lea.vmem %s0, %s139
          %s141 = smul.u32 22, %s16
          %s142 = ssub.s32 43, %s141
          %p143 = scmp.lt.s32.totalorder %s142, 22
          %s144 = scalar_select %p143, %s142, 22
          %s145 = smul.u32 64, %s144
          %s146 = smul.u32 %s145, 17
        $region24: #{conv2d_1x1.1} parent=19 // pred_fallthru
          _
      $region20: #{conv2d_1x1.1} parent=5 // pred_fallthru
        _
      %p147 = scmp.le.s32.totalorder 1, %s8
      %p148 = scmp.lt.s32.totalorder %s8, 3
      %p149 = pnand %p147, %p148
      %p150 = pneg %p149
      // Predicated region
      $region25: #{conv2d_1x1.1} parent=5 // pred_check
        _
      $region26: #{conv2d_1x1.1} parent=5 // pred_check_branch
        %152 = sbr.rel (%p149) target = $region28
      $region27: #{conv2d_1x1.1} parent=5 // pred_region
        %s153 = ssub.s32 %s8, 1
        %s154 = smul.u32 22, %s18
        %s155 = ssub.s32 43, %s154
        %p156 = scmp.lt.s32.totalorder %s155, 22
        %s157 = scalar_select %p156, %s155, 22
        %s158 = smul.u32 64, %s157
        %s159 = smul.u32 %s158, 17
        %p160 = scmp.lt.s32.totalorder %s154, 42
        %s161 = scalar_select %p160, %s154, 42
        %s162 = smul.addr %s161, 17
        %s163 = smul.addr %s162, 4
        %s164 = scalar_lea.vmem %s0, %s163
        %p165 = pneg %p46
        %p166 = pneg %p43
        %p167 = scmp.lt.s32.totalorder %s17, 0
        %s168 = scalar_select %p167, %s17, 0
        %s169 = smul.addr %s168, 258
        %s170 = smul.addr %s169, 8
        %s171 = scalar_lea.vmem %s1, %s170
        %p172 = pneg %p72
        %p173 = pneg %p69
        %p174 = pneg %p100
        %p175 = pneg %p97
        %s176 = sand.u32 %s87, 1
        %s177 = sand.u32 %s87, 1
        %s178 = smul.addr %s177, 176
        %s179 = scalar_lea.vmem [#allocation2], %s178
        %s180 = smul.u32 22, %s18
        %s181 = ssub.s32 43, %s180
        %p182 = scmp.lt.s32.totalorder %s181, 22
        %s183 = scalar_select %p182, %s181, 22
        %s184 = smul.u32 64, %s183
        %s185 = smul.u32 %s184, 17
        %p186 = scmp.lt.s32.totalorder %s180, 42
        %s187 = scalar_select %p186, %s180, 42
        %s188 = smul.addr %s187, 17
        %s189 = smul.addr %s188, 4
        %s190 = scalar_lea.vmem %s0, %s189
        %s191 = smul.u32 22, %s18
        %s192 = ssub.s32 43, %s191
        %p193 = scmp.lt.s32.totalorder %s192, 22
        %s194 = scalar_select %p193, %s192, 22
        %s195 = smul.u32 64, %s194
        %s196 = smul.u32 %s195, 17
        %p197 = scmp.lt.s32.totalorder %s17, 0
        %s198 = scalar_select %p197, %s17, 0
        %s199 = smul.addr %s198, 258
        %s200 = smul.addr %s199, 8
        %s201 = scalar_lea.vmem %s1, %s200
        %s202 = smul.u32 22, %s18
        %s203 = ssub.s32 43, %s202
        %p204 = scmp.lt.s32.totalorder %s203, 22
        %s205 = scalar_select %p204, %s203, 22
        %s206 = smul.u32 128, %s205
        %v208 = vld [vmem:[%s201] sm:$0xff]
        %v209 = vld [vmem:[%s201 + $0x8] sm:$0xff]
        %v210 = vld [vmem:[%s201 + $0x10] sm:$0xff]
        %v211 = vld [vmem:[%s201 + $0x18] sm:$0xff]
        %v212 = vld [vmem:[%s201 + $0x20] sm:$0xff]
        %v213 = vld [vmem:[%s201 + $0x28] sm:$0xff]
        %v214 = vld [vmem:[%s201 + $0x30] sm:$0xff]
        %v215 = vld [vmem:[%s201 + $0x38] sm:$0xff]
        %v216 = vld [vmem:[%s201 + $0x40] sm:$0xff]
        %v217 = vld [vmem:[%s201 + $0x48] sm:$0xff]
        %v218 = vld [vmem:[%s201 + $0x50] sm:$0xff]
        %v219 = vld [vmem:[%s201 + $0x58] sm:$0xff]
        %v220 = vld [vmem:[%s201 + $0x60] sm:$0xff]
        %v221 = vld [vmem:[%s201 + $0x68] sm:$0xff]
        %v222 = vld [vmem:[%s201 + $0x70] sm:$0xff]
        %v223 = vld [vmem:[%s201 + $0x78] sm:$0xff]
        %v224 = vld [vmem:[%s201 + $0x80] sm:$0xff]
        %v225 = vld [vmem:[%s201 + $0x88] sm:$0xff]
        %v226 = vld [vmem:[%s201 + $0x90] sm:$0xff]
        %v227 = vld [vmem:[%s201 + $0x98] sm:$0xff]
        %v228 = vld [vmem:[%s201 + $0xa0] sm:$0xff]
        %v229 = vld [vmem:[%s201 + $0xa8] sm:$0xff]
        %v230 = vld [vmem:[%s201 + $0xb0] sm:$0xff]
        %v231 = vld [vmem:[%s201 + $0xb8] sm:$0xff]
        %v232 = vld [vmem:[%s201 + $0xc0] sm:$0xff]
        %v233 = vld [vmem:[%s201 + $0xc8] sm:$0xff]
        %v234 = vld [vmem:[%s201 + $0xd0] sm:$0xff]
        %v235 = vld [vmem:[%s201 + $0xd8] sm:$0xff]
        %v236 = vld [vmem:[%s201 + $0xe0] sm:$0xff]
        %v237 = vld [vmem:[%s201 + $0xe8] sm:$0xff]
        %v238 = vld [vmem:[%s201 + $0xf0] sm:$0xff]
        %v239 = vld [vmem:[%s201 + $0xf8] sm:$0xff]
        %v240 = vld [vmem:[%s201 + $0x100] sm:$0xff]
        %v241 = vld [vmem:[%s201 + $0x108] sm:$0xff]
        %v242 = vld [vmem:[%s201 + $0x110] sm:$0xff]
        %v243 = vld [vmem:[%s201 + $0x118] sm:$0xff]
        %v244 = vld [vmem:[%s201 + $0x120] sm:$0xff]
        %v245 = vld [vmem:[%s201 + $0x128] sm:$0xff]
        %v246 = vld [vmem:[%s201 + $0x130] sm:$0xff]
        %v247 = vld [vmem:[%s201 + $0x138] sm:$0xff]
        %v248 = vld [vmem:[%s201 + $0x140] sm:$0xff]
        %v249 = vld [vmem:[%s201 + $0x148] sm:$0xff]
        %v250 = vld [vmem:[%s201 + $0x150] sm:$0xff]
        %v251 = vld [vmem:[%s201 + $0x158] sm:$0xff]
        %v252 = vld [vmem:[%s201 + $0x160] sm:$0xff]
        %v253 = vld [vmem:[%s201 + $0x168] sm:$0xff]
        %v254 = vld [vmem:[%s201 + $0x170] sm:$0xff]
        %v255 = vld [vmem:[%s201 + $0x178] sm:$0xff]
        %v256 = vld [vmem:[%s201 + $0x180] sm:$0xff]
        %v257 = vld [vmem:[%s201 + $0x188] sm:$0xff]
        %v258 = vld [vmem:[%s201 + $0x190] sm:$0xff]
        %v259 = vld [vmem:[%s201 + $0x198] sm:$0xff]
        %v260 = vld [vmem:[%s201 + $0x1a0] sm:$0xff]
        %v261 = vld [vmem:[%s201 + $0x1a8] sm:$0xff]
        %v262 = vld [vmem:[%s201 + $0x1b0] sm:$0xff]
        %v263 = vld [vmem:[%s201 + $0x1b8] sm:$0xff]
        %v264 = vld [vmem:[%s201 + $0x1c0] sm:$0xff]
        %v265 = vld [vmem:[%s201 + $0x1c8] sm:$0xff]
        %v266 = vld [vmem:[%s201 + $0x1d0] sm:$0xff]
        %v267 = vld [vmem:[%s201 + $0x1d8] sm:$0xff]
        %v268 = vld [vmem:[%s201 + $0x1e0] sm:$0xff]
        %v269 = vld [vmem:[%s201 + $0x1e8] sm:$0xff]
        %v270 = vld [vmem:[%s201 + $0x1f0] sm:$0xff]
        %v271 = vld [vmem:[%s201 + $0x1f8] sm:$0xff]
        %v272 = vld [vmem:[%s201 + $0x200] sm:$0xff]
        %v273 = vld [vmem:[%s201 + $0x208] sm:$0xff]
        %v274 = vld [vmem:[%s201 + $0x210] sm:$0xff]
        %v275 = vld [vmem:[%s201 + $0x218] sm:$0xff]
        %v276 = vld [vmem:[%s201 + $0x220] sm:$0xff]
        %v277 = vld [vmem:[%s201 + $0x228] sm:$0xff]
        %v278 = vld [vmem:[%s201 + $0x230] sm:$0xff]
        %v279 = vld [vmem:[%s201 + $0x238] sm:$0xff]
        %v280 = vld [vmem:[%s201 + $0x240] sm:$0xff]
        %v281 = vld [vmem:[%s201 + $0x248] sm:$0xff]
        %v282 = vld [vmem:[%s201 + $0x250] sm:$0xff]
        %v283 = vld [vmem:[%s201 + $0x258] sm:$0xff]
        %v284 = vld [vmem:[%s201 + $0x260] sm:$0xff]
        %v285 = vld [vmem:[%s201 + $0x268] sm:$0xff]
        %v286 = vld [vmem:[%s201 + $0x270] sm:$0xff]
        %v287 = vld [vmem:[%s201 + $0x278] sm:$0xff]
        %v288 = vld [vmem:[%s201 + $0x280] sm:$0xff]
        %v289 = vld [vmem:[%s201 + $0x288] sm:$0xff]
        %v290 = vld [vmem:[%s201 + $0x290] sm:$0xff]
        %v291 = vld [vmem:[%s201 + $0x298] sm:$0xff]
        %v292 = vld [vmem:[%s201 + $0x2a0] sm:$0xff]
        %v293 = vld [vmem:[%s201 + $0x2a8] sm:$0xff]
        %v294 = vld [vmem:[%s201 + $0x2b0] sm:$0xff]
        %v295 = vld [vmem:[%s201 + $0x2b8] sm:$0xff]
        %v296 = vld [vmem:[%s201 + $0x2c0] sm:$0xff]
        %v297 = vld [vmem:[%s201 + $0x2c8] sm:$0xff]
        %v298 = vld [vmem:[%s201 + $0x2d0] sm:$0xff]
        %v299 = vld [vmem:[%s201 + $0x2d8] sm:$0xff]
        %v300 = vld [vmem:[%s201 + $0x2e0] sm:$0xff]
        %v301 = vld [vmem:[%s201 + $0x2e8] sm:$0xff]
        %v302 = vld [vmem:[%s201 + $0x2f0] sm:$0xff]
        %v303 = vld [vmem:[%s201 + $0x2f8] sm:$0xff]
        %v304 = vld [vmem:[%s201 + $0x300] sm:$0xff]
        %v305 = vld [vmem:[%s201 + $0x308] sm:$0xff]
        %v306 = vld [vmem:[%s201 + $0x310] sm:$0xff]
        %v307 = vld [vmem:[%s201 + $0x318] sm:$0xff]
        %v308 = vld [vmem:[%s201 + $0x320] sm:$0xff]
        %v309 = vld [vmem:[%s201 + $0x328] sm:$0xff]
        %v310 = vld [vmem:[%s201 + $0x330] sm:$0xff]
        %v311 = vld [vmem:[%s201 + $0x338] sm:$0xff]
        %v312 = vld [vmem:[%s201 + $0x340] sm:$0xff]
        %v313 = vld [vmem:[%s201 + $0x348] sm:$0xff]
        %v314 = vld [vmem:[%s201 + $0x350] sm:$0xff]
        %v315 = vld [vmem:[%s201 + $0x358] sm:$0xff]
        %v316 = vld [vmem:[%s201 + $0x360] sm:$0xff]
        %v317 = vld [vmem:[%s201 + $0x368] sm:$0xff]
        %v318 = vld [vmem:[%s201 + $0x370] sm:$0xff]
        %v319 = vld [vmem:[%s201 + $0x378] sm:$0xff]
        %v320 = vld [vmem:[%s201 + $0x380] sm:$0xff]
        %v321 = vld [vmem:[%s201 + $0x388] sm:$0xff]
        %v322 = vld [vmem:[%s201 + $0x390] sm:$0xff]
        %v323 = vld [vmem:[%s201 + $0x398] sm:$0xff]
        %v324 = vld [vmem:[%s201 + $0x3a0] sm:$0xff]
        %v325 = vld [vmem:[%s201 + $0x3a8] sm:$0xff]
        %v326 = vld [vmem:[%s201 + $0x3b0] sm:$0xff]
        %v327 = vld [vmem:[%s201 + $0x3b8] sm:$0xff]
        %v328 = vld [vmem:[%s201 + $0x3c0] sm:$0xff]
        %v329 = vld [vmem:[%s201 + $0x3c8] sm:$0xff]
        %v330 = vld [vmem:[%s201 + $0x3d0] sm:$0xff]
        %v331 = vld [vmem:[%s201 + $0x3d8] sm:$0xff]
        %v332 = vld [vmem:[%s201 + $0x3e0] sm:$0xff]
        %v333 = vld [vmem:[%s201 + $0x3e8] sm:$0xff]
        %v334 = vld [vmem:[%s201 + $0x3f0] sm:$0xff]
        %v335 = vld [vmem:[%s201 + $0x3f8] sm:$0xff]
        %v336 = vld [vmem:[%s201 + $0x400] sm:$0xff]
        %v337 = vld [vmem:[%s201 + $0x408] sm:$0xff]
        %v338 = vld [vmem:[%s201 + $0x410] sm:$0xff]
        %v339 = vld [vmem:[%s201 + $0x418] sm:$0xff]
        %v340 = vld [vmem:[%s201 + $0x420] sm:$0xff]
        %v341 = vld [vmem:[%s201 + $0x428] sm:$0xff]
        %v342 = vld [vmem:[%s201 + $0x430] sm:$0xff]
        %v343 = vld [vmem:[%s201 + $0x438] sm:$0xff]
        %v344 = vld [vmem:[%s201 + $0x440] sm:$0xff]
        %v345 = vld [vmem:[%s201 + $0x448] sm:$0xff]
        %v346 = vld [vmem:[%s201 + $0x450] sm:$0xff]
        %v347 = vld [vmem:[%s201 + $0x458] sm:$0xff]
        %v348 = vld [vmem:[%s201 + $0x460] sm:$0xff]
        %v349 = vld [vmem:[%s201 + $0x468] sm:$0xff]
        %v350 = vld [vmem:[%s201 + $0x470] sm:$0xff]
        %v351 = vld [vmem:[%s201 + $0x478] sm:$0xff]
        %v352 = vld [vmem:[%s201 + $0x480] sm:$0xff]
        %v353 = vld [vmem:[%s201 + $0x488] sm:$0xff]
        %v354 = vld [vmem:[%s201 + $0x490] sm:$0xff]
        %v355 = vld [vmem:[%s201 + $0x498] sm:$0xff]
        %v356 = vld [vmem:[%s201 + $0x4a0] sm:$0xff]
        %v357 = vld [vmem:[%s201 + $0x4a8] sm:$0xff]
        %v358 = vld [vmem:[%s201 + $0x4b0] sm:$0xff]
        %v359 = vld [vmem:[%s201 + $0x4b8] sm:$0xff]
        %v360 = vld [vmem:[%s201 + $0x4c0] sm:$0xff]
        %v361 = vld [vmem:[%s201 + $0x4c8] sm:$0xff]
        %v362 = vld [vmem:[%s201 + $0x4d0] sm:$0xff]
        %v363 = vld [vmem:[%s201 + $0x4d8] sm:$0xff]
        %v364 = vld [vmem:[%s201 + $0x4e0] sm:$0xff]
        %v365 = vld [vmem:[%s201 + $0x4e8] sm:$0xff]
        %v366 = vld [vmem:[%s201 + $0x4f0] sm:$0xff]
        %v367 = vld [vmem:[%s201 + $0x4f8] sm:$0xff]
        %v368 = vld [vmem:[%s201 + $0x500] sm:$0xff]
        %v369 = vld [vmem:[%s201 + $0x508] sm:$0xff]
        %v370 = vld [vmem:[%s201 + $0x510] sm:$0xff]
        %v371 = vld [vmem:[%s201 + $0x518] sm:$0xff]
        %v372 = vld [vmem:[%s201 + $0x520] sm:$0xff]
        %v373 = vld [vmem:[%s201 + $0x528] sm:$0xff]
        %v374 = vld [vmem:[%s201 + $0x530] sm:$0xff]
        %v375 = vld [vmem:[%s201 + $0x538] sm:$0xff]
        %v376 = vld [vmem:[%s201 + $0x540] sm:$0xff]
        %v377 = vld [vmem:[%s201 + $0x548] sm:$0xff]
        %v378 = vld [vmem:[%s201 + $0x550] sm:$0xff]
        %v379 = vld [vmem:[%s201 + $0x558] sm:$0xff]
        %v380 = vld [vmem:[%s201 + $0x560] sm:$0xff]
        %v381 = vld [vmem:[%s201 + $0x568] sm:$0xff]
        %v382 = vld [vmem:[%s201 + $0x570] sm:$0xff]
        %v383 = vld [vmem:[%s201 + $0x578] sm:$0xff]
        %v384 = vld [vmem:[%s201 + $0x580] sm:$0xff]
        %v385 = vld [vmem:[%s201 + $0x588] sm:$0xff]
        %v386 = vld [vmem:[%s201 + $0x590] sm:$0xff]
        %v387 = vld [vmem:[%s201 + $0x598] sm:$0xff]
        %v388 = vld [vmem:[%s201 + $0x5a0] sm:$0xff]
        %v389 = vld [vmem:[%s201 + $0x5a8] sm:$0xff]
        %v390 = vld [vmem:[%s201 + $0x5b0] sm:$0xff]
        %v391 = vld [vmem:[%s201 + $0x5b8] sm:$0xff]
        %v392 = vld [vmem:[%s201 + $0x5c0] sm:$0xff]
        %v393 = vld [vmem:[%s201 + $0x5c8] sm:$0xff]
        %v394 = vld [vmem:[%s201 + $0x5d0] sm:$0xff]
        %v395 = vld [vmem:[%s201 + $0x5d8] sm:$0xff]
        %v396 = vld [vmem:[%s201 + $0x5e0] sm:$0xff]
        %v397 = vld [vmem:[%s201 + $0x5e8] sm:$0xff]
        %v398 = vld [vmem:[%s201 + $0x5f0] sm:$0xff]
        %v399 = vld [vmem:[%s201 + $0x5f8] sm:$0xff]
        %v400 = vld [vmem:[%s201 + $0x600] sm:$0xff]
        %v401 = vld [vmem:[%s201 + $0x608] sm:$0xff]
        %v402 = vld [vmem:[%s201 + $0x610] sm:$0xff]
        %v403 = vld [vmem:[%s201 + $0x618] sm:$0xff]
        %v404 = vld [vmem:[%s201 + $0x620] sm:$0xff]
        %v405 = vld [vmem:[%s201 + $0x628] sm:$0xff]
        %v406 = vld [vmem:[%s201 + $0x630] sm:$0xff]
        %v407 = vld [vmem:[%s201 + $0x638] sm:$0xff]
        %v408 = vld [vmem:[%s201 + $0x640] sm:$0xff]
        %v409 = vld [vmem:[%s201 + $0x648] sm:$0xff]
        %v410 = vld [vmem:[%s201 + $0x650] sm:$0xff]
        %v411 = vld [vmem:[%s201 + $0x658] sm:$0xff]
        %v412 = vld [vmem:[%s201 + $0x660] sm:$0xff]
        %v413 = vld [vmem:[%s201 + $0x668] sm:$0xff]
        %v414 = vld [vmem:[%s201 + $0x670] sm:$0xff]
        %v415 = vld [vmem:[%s201 + $0x678] sm:$0xff]
        %v416 = vld [vmem:[%s201 + $0x680] sm:$0xff]
        %v417 = vld [vmem:[%s201 + $0x688] sm:$0xff]
        %v418 = vld [vmem:[%s201 + $0x690] sm:$0xff]
        %v419 = vld [vmem:[%s201 + $0x698] sm:$0xff]
        %v420 = vld [vmem:[%s201 + $0x6a0] sm:$0xff]
        %v421 = vld [vmem:[%s201 + $0x6a8] sm:$0xff]
        %v422 = vld [vmem:[%s201 + $0x6b0] sm:$0xff]
        %v423 = vld [vmem:[%s201 + $0x6b8] sm:$0xff]
        %v424 = vld [vmem:[%s201 + $0x6c0] sm:$0xff]
        %v425 = vld [vmem:[%s201 + $0x6c8] sm:$0xff]
        %v426 = vld [vmem:[%s201 + $0x6d0] sm:$0xff]
        %v427 = vld [vmem:[%s201 + $0x6d8] sm:$0xff]
        %v428 = vld [vmem:[%s201 + $0x6e0] sm:$0xff]
        %v429 = vld [vmem:[%s201 + $0x6e8] sm:$0xff]
        %v430 = vld [vmem:[%s201 + $0x6f0] sm:$0xff]
        %v431 = vld [vmem:[%s201 + $0x6f8] sm:$0xff]
        %v432 = vld [vmem:[%s201 + $0x700] sm:$0xff]
        %v433 = vld [vmem:[%s201 + $0x708] sm:$0xff]
        %v434 = vld [vmem:[%s201 + $0x710] sm:$0xff]
        %v435 = vld [vmem:[%s201 + $0x718] sm:$0xff]
        %v436 = vld [vmem:[%s201 + $0x720] sm:$0xff]
        %v437 = vld [vmem:[%s201 + $0x728] sm:$0xff]
        %v438 = vld [vmem:[%s201 + $0x730] sm:$0xff]
        %v439 = vld [vmem:[%s201 + $0x738] sm:$0xff]
        %v440 = vld [vmem:[%s201 + $0x740] sm:$0xff]
        %v441 = vld [vmem:[%s201 + $0x748] sm:$0xff]
        %v442 = vld [vmem:[%s201 + $0x750] sm:$0xff]
        %v443 = vld [vmem:[%s201 + $0x758] sm:$0xff]
        %v444 = vld [vmem:[%s201 + $0x760] sm:$0xff]
        %v445 = vld [vmem:[%s201 + $0x768] sm:$0xff]
        %v446 = vld [vmem:[%s201 + $0x770] sm:$0xff]
        %v447 = vld [vmem:[%s201 + $0x778] sm:$0xff]
        %v448 = vld [vmem:[%s201 + $0x780] sm:$0xff]
        %v449 = vld [vmem:[%s201 + $0x788] sm:$0xff]
        %v450 = vld [vmem:[%s201 + $0x790] sm:$0xff]
        %v451 = vld [vmem:[%s201 + $0x798] sm:$0xff]
        %v452 = vld [vmem:[%s201 + $0x7a0] sm:$0xff]
        %v453 = vld [vmem:[%s201 + $0x7a8] sm:$0xff]
        %v454 = vld [vmem:[%s201 + $0x7b0] sm:$0xff]
        %v455 = vld [vmem:[%s201 + $0x7b8] sm:$0xff]
        %v456 = vld [vmem:[%s201 + $0x7c0] sm:$0xff]
        %v457 = vld [vmem:[%s201 + $0x7c8] sm:$0xff]
        %v458 = vld [vmem:[%s201 + $0x7d0] sm:$0xff]
        %v459 = vld [vmem:[%s201 + $0x7d8] sm:$0xff]
        %v460 = vld [vmem:[%s201 + $0x7e0] sm:$0xff]
        %v461 = vld [vmem:[%s201 + $0x7e8] sm:$0xff]
        %v462 = vld [vmem:[%s201 + $0x7f0] sm:$0xff]
        %v463 = vld [vmem:[%s201 + $0x7f8] sm:$0xff]
        %v464 = vld [vmem:[%s201 + $0x800] sm:$0xff]
        %v465 = vld [vmem:[%s201 + $0x808] sm:$0xff]
        %v466 = vpack.c.bf16 %v209, %v208
        %v467 = vpack.c.bf16 %v211, %v210
        %v468 = vpack.c.bf16 %v213, %v212
        %v469 = vpack.c.bf16 %v215, %v214
        %v470 = vpack.c.bf16 %v217, %v216
        %v471 = vpack.c.bf16 %v219, %v218
        %v472 = vpack.c.bf16 %v221, %v220
        %v473 = vpack.c.bf16 %v223, %v222
        %v474 = vpack.c.bf16 %v225, %v224
        %v475 = vpack.c.bf16 %v227, %v226
        %v476 = vpack.c.bf16 %v229, %v228
        %v477 = vpack.c.bf16 %v231, %v230
        %v478 = vpack.c.bf16 %v233, %v232
        %v479 = vpack.c.bf16 %v235, %v234
        %v480 = vpack.c.bf16 %v237, %v236
        %v481 = vpack.c.bf16 %v239, %v238
        %v482 = vpack.c.bf16 %v241, %v240
        %v483 = vpack.c.bf16 %v243, %v242
        %v484 = vpack.c.bf16 %v245, %v244
        %v485 = vpack.c.bf16 %v247, %v246
        %v486 = vpack.c.bf16 %v249, %v248
        %v487 = vpack.c.bf16 %v251, %v250
        %v488 = vpack.c.bf16 %v253, %v252
        %v489 = vpack.c.bf16 %v255, %v254
        %v490 = vpack.c.bf16 %v257, %v256
        %v491 = vpack.c.bf16 %v259, %v258
        %v492 = vpack.c.bf16 %v261, %v260
        %v493 = vpack.c.bf16 %v263, %v262
        %v494 = vpack.c.bf16 %v265, %v264
        %v495 = vpack.c.bf16 %v267, %v266
        %v496 = vpack.c.bf16 %v269, %v268
        %v497 = vpack.c.bf16 %v271, %v270
        %v498 = vpack.c.bf16 %v273, %v272
        %v499 = vpack.c.bf16 %v275, %v274
        %v500 = vpack.c.bf16 %v277, %v276
        %v501 = vpack.c.bf16 %v279, %v278
        %v502 = vpack.c.bf16 %v281, %v280
        %v503 = vpack.c.bf16 %v283, %v282
        %v504 = vpack.c.bf16 %v285, %v284
        %v505 = vpack.c.bf16 %v287, %v286
        %v506 = vpack.c.bf16 %v289, %v288
        %v507 = vpack.c.bf16 %v291, %v290
        %v508 = vpack.c.bf16 %v293, %v292
        %v509 = vpack.c.bf16 %v295, %v294
        %v510 = vpack.c.bf16 %v297, %v296
        %v511 = vpack.c.bf16 %v299, %v298
        %v512 = vpack.c.bf16 %v301, %v300
        %v513 = vpack.c.bf16 %v303, %v302
        %v514 = vpack.c.bf16 %v305, %v304
        %v515 = vpack.c.bf16 %v307, %v306
        %v516 = vpack.c.bf16 %v309, %v308
        %v517 = vpack.c.bf16 %v311, %v310
        %v518 = vpack.c.bf16 %v313, %v312
        %v519 = vpack.c.bf16 %v315, %v314
        %v520 = vpack.c.bf16 %v317, %v316
        %v521 = vpack.c.bf16 %v319, %v318
        %v522 = vpack.c.bf16 %v321, %v320
        %v523 = vpack.c.bf16 %v323, %v322
        %v524 = vpack.c.bf16 %v325, %v324
        %v525 = vpack.c.bf16 %v327, %v326
        %v526 = vpack.c.bf16 %v329, %v328
        %v527 = vpack.c.bf16 %v331, %v330
        %v528 = vpack.c.bf16 %v333, %v332
        %v529 = vpack.c.bf16 %v335, %v334
        %v530 = vpack.c.bf16 %v337, %v336
        %v531 = vpack.c.bf16 %v339, %v338
        %v532 = vpack.c.bf16 %v341, %v340
        %v533 = vpack.c.bf16 %v343, %v342
        %v534 = vpack.c.bf16 %v345, %v344
        %v535 = vpack.c.bf16 %v347, %v346
        %v536 = vpack.c.bf16 %v349, %v348
        %v537 = vpack.c.bf16 %v351, %v350
        %v538 = vpack.c.bf16 %v353, %v352
        %v539 = vpack.c.bf16 %v355, %v354
        %v540 = vpack.c.bf16 %v357, %v356
        %v541 = vpack.c.bf16 %v359, %v358
        %v542 = vpack.c.bf16 %v361, %v360
        %v543 = vpack.c.bf16 %v363, %v362
        %v544 = vpack.c.bf16 %v365, %v364
        %v545 = vpack.c.bf16 %v367, %v366
        %v546 = vpack.c.bf16 %v369, %v368
        %v547 = vpack.c.bf16 %v371, %v370
        %v548 = vpack.c.bf16 %v373, %v372
        %v549 = vpack.c.bf16 %v375, %v374
        %v550 = vpack.c.bf16 %v377, %v376
        %v551 = vpack.c.bf16 %v379, %v378
        %v552 = vpack.c.bf16 %v381, %v380
        %v553 = vpack.c.bf16 %v383, %v382
        %v554 = vpack.c.bf16 %v385, %v384
        %v555 = vpack.c.bf16 %v387, %v386
        %v556 = vpack.c.bf16 %v389, %v388
        %v557 = vpack.c.bf16 %v391, %v390
        %v558 = vpack.c.bf16 %v393, %v392
        %v559 = vpack.c.bf16 %v395, %v394
        %v560 = vpack.c.bf16 %v397, %v396
        %v561 = vpack.c.bf16 %v399, %v398
        %v562 = vpack.c.bf16 %v401, %v400
        %v563 = vpack.c.bf16 %v403, %v402
        %v564 = vpack.c.bf16 %v405, %v404
        %v565 = vpack.c.bf16 %v407, %v406
        %v566 = vpack.c.bf16 %v409, %v408
        %v567 = vpack.c.bf16 %v411, %v410
        %v568 = vpack.c.bf16 %v413, %v412
        %v569 = vpack.c.bf16 %v415, %v414
        %v570 = vpack.c.bf16 %v417, %v416
        %v571 = vpack.c.bf16 %v419, %v418
        %v572 = vpack.c.bf16 %v421, %v420
        %v573 = vpack.c.bf16 %v423, %v422
        %v574 = vpack.c.bf16 %v425, %v424
        %v575 = vpack.c.bf16 %v427, %v426
        %v576 = vpack.c.bf16 %v429, %v428
        %v577 = vpack.c.bf16 %v431, %v430
        %v578 = vpack.c.bf16 %v433, %v432
        %v579 = vpack.c.bf16 %v435, %v434
        %v580 = vpack.c.bf16 %v437, %v436
        %v581 = vpack.c.bf16 %v439, %v438
        %v582 = vpack.c.bf16 %v441, %v440
        %v583 = vpack.c.bf16 %v443, %v442
        %v584 = vpack.c.bf16 %v445, %v444
        %v585 = vpack.c.bf16 %v447, %v446
        %v586 = vpack.c.bf16 %v449, %v448
        %v587 = vpack.c.bf16 %v451, %v450
        %v588 = vpack.c.bf16 %v453, %v452
        %v589 = vpack.c.bf16 %v455, %v454
        %v590 = vpack.c.bf16 %v457, %v456
        %v591 = vpack.c.bf16 %v459, %v458
        %v592 = vpack.c.bf16 %v461, %v460
        %v593 = vpack.c.bf16 %v463, %v462
        %v594 = vpack.c.bf16 %v465, %v464
        %v595 = vld [vmem:[%s190] sm:$0xff]
        %v596 = vld [vmem:[%s190 + $0x8] sm:$0xff]
        %v597 = vld [vmem:[%s190 + $0x10] sm:$0xff]
        %v598 = vld [vmem:[%s190 + $0x18] sm:$0xff]
        %v599 = vld [vmem:[%s190 + $0x20] sm:$0xff]
        %v600 = vld [vmem:[%s190 + $0x28] sm:$0xff]
        %v601 = vld [vmem:[%s190 + $0x30] sm:$0xff]
        %v602 = vld [vmem:[%s190 + $0x38] sm:$0xff]
        %v603 = vld [vmem:[%s190 + $0x40] sm:$0xf]
        %v604 = vld [vmem:[%s190 + $0x44] sm:$0xff]
        %v605 = vld [vmem:[%s190 + $0x4c] sm:$0xff]
        %v606 = vld [vmem:[%s190 + $0x54] sm:$0xff]
        %v607 = vld [vmem:[%s190 + $0x5c] sm:$0xff]
        %v608 = vld [vmem:[%s190 + $0x64] sm:$0xff]
        %v609 = vld [vmem:[%s190 + $0x6c] sm:$0xff]
        %v610 = vld [vmem:[%s190 + $0x74] sm:$0xff]
        %v611 = vld [vmem:[%s190 + $0x7c] sm:$0xff]
        %v612 = vld [vmem:[%s190 + $0x84] sm:$0xf]
        %v613 = vld [vmem:[%s190 + $0x88] sm:$0xff]
        %v614 = vld [vmem:[%s190 + $0x90] sm:$0xff]
        %v615 = vld [vmem:[%s190 + $0x98] sm:$0xff]
        %v616 = vld [vmem:[%s190 + $0xa0] sm:$0xff]
        %v617 = vld [vmem:[%s190 + $0xa8] sm:$0xff]
        %v618 = vld [vmem:[%s190 + $0xb0] sm:$0xff]
        %v619 = vld [vmem:[%s190 + $0xb8] sm:$0xff]
        %v620 = vld [vmem:[%s190 + $0xc0] sm:$0xff]
        %v621 = vld [vmem:[%s190 + $0xc8] sm:$0xf]
        %v622 = vld [vmem:[%s190 + $0xcc] sm:$0xff]
        %v623 = vld [vmem:[%s190 + $0xd4] sm:$0xff]
        %v624 = vld [vmem:[%s190 + $0xdc] sm:$0xff]
        %v625 = vld [vmem:[%s190 + $0xe4] sm:$0xff]
        %v626 = vld [vmem:[%s190 + $0xec] sm:$0xff]
        %v627 = vld [vmem:[%s190 + $0xf4] sm:$0xff]
        %v628 = vld [vmem:[%s190 + $0xfc] sm:$0xff]
        %v629 = vld [vmem:[%s190 + $0x104] sm:$0xff]
        %v630 = vld [vmem:[%s190 + $0x10c] sm:$0xf]
        %v631 = vld [vmem:[%s190 + $0x110] sm:$0xff]
        %v632 = vld [vmem:[%s190 + $0x118] sm:$0xff]
        %v633 = vld [vmem:[%s190 + $0x120] sm:$0xff]
        %v634 = vld [vmem:[%s190 + $0x128] sm:$0xff]
        %v635 = vld [vmem:[%s190 + $0x130] sm:$0xff]
        %v636 = vld [vmem:[%s190 + $0x138] sm:$0xff]
        %v637 = vld [vmem:[%s190 + $0x140] sm:$0xff]
        %v638 = vld [vmem:[%s190 + $0x148] sm:$0xff]
        %v639 = vld [vmem:[%s190 + $0x150] sm:$0xf]
        %v640 = vld [vmem:[%s190 + $0x154] sm:$0xff]
        %v641 = vld [vmem:[%s190 + $0x15c] sm:$0xff]
        %v642 = vld [vmem:[%s190 + $0x164] sm:$0xff]
        %v643 = vld [vmem:[%s190 + $0x16c] sm:$0xff]
        %v644 = vld [vmem:[%s190 + $0x174] sm:$0xff]
        %v645 = vld [vmem:[%s190 + $0x17c] sm:$0xff]
        %v646 = vld [vmem:[%s190 + $0x184] sm:$0xff]
        %v647 = vld [vmem:[%s190 + $0x18c] sm:$0xff]
        %v648 = vld [vmem:[%s190 + $0x194] sm:$0xf]
        %v649 = vld [vmem:[%s190 + $0x198] sm:$0xff]
        %v650 = vld [vmem:[%s190 + $0x1a0] sm:$0xff]
        %v651 = vld [vmem:[%s190 + $0x1a8] sm:$0xff]
        %v652 = vld [vmem:[%s190 + $0x1b0] sm:$0xff]
        %v653 = vld [vmem:[%s190 + $0x1b8] sm:$0xff]
        %v654 = vld [vmem:[%s190 + $0x1c0] sm:$0xff]
        %v655 = vld [vmem:[%s190 + $0x1c8] sm:$0xff]
        %v656 = vld [vmem:[%s190 + $0x1d0] sm:$0xff]
        %v657 = vld [vmem:[%s190 + $0x1d8] sm:$0xf]
        %v658 = vld [vmem:[%s190 + $0x1dc] sm:$0xff]
        %v659 = vld [vmem:[%s190 + $0x1e4] sm:$0xff]
        %v660 = vld [vmem:[%s190 + $0x1ec] sm:$0xff]
        %v661 = vld [vmem:[%s190 + $0x1f4] sm:$0xff]
        %v662 = vld [vmem:[%s190 + $0x1fc] sm:$0xff]
        %v663 = vld [vmem:[%s190 + $0x204] sm:$0xff]
        %v664 = vld [vmem:[%s190 + $0x20c] sm:$0xff]
        %v665 = vld [vmem:[%s190 + $0x214] sm:$0xff]
        %v666 = vld [vmem:[%s190 + $0x21c] sm:$0xf]
        %v667 = vld [vmem:[%s190 + $0x220] sm:$0xff]
        %v668 = vld [vmem:[%s190 + $0x228] sm:$0xff]
        %v669 = vld [vmem:[%s190 + $0x230] sm:$0xff]
        %v670 = vld [vmem:[%s190 + $0x238] sm:$0xff]
        %v671 = vld [vmem:[%s190 + $0x240] sm:$0xff]
        %v672 = vld [vmem:[%s190 + $0x248] sm:$0xff]
        %v673 = vld [vmem:[%s190 + $0x250] sm:$0xff]
        %v674 = vld [vmem:[%s190 + $0x258] sm:$0xff]
        %v675 = vld [vmem:[%s190 + $0x260] sm:$0xf]
        %v676 = vld [vmem:[%s190 + $0x264] sm:$0xff]
        %v677 = vld [vmem:[%s190 + $0x26c] sm:$0xff]
        %v678 = vld [vmem:[%s190 + $0x274] sm:$0xff]
        %v679 = vld [vmem:[%s190 + $0x27c] sm:$0xff]
        %v680 = vld [vmem:[%s190 + $0x284] sm:$0xff]
        %v681 = vld [vmem:[%s190 + $0x28c] sm:$0xff]
        %v682 = vld [vmem:[%s190 + $0x294] sm:$0xff]
        %v683 = vld [vmem:[%s190 + $0x29c] sm:$0xff]
        %v684 = vld [vmem:[%s190 + $0x2a4] sm:$0xf]
        %v685 = vld [vmem:[%s190 + $0x2a8] sm:$0xff]
        %v686 = vld [vmem:[%s190 + $0x2b0] sm:$0xff]
        %v687 = vld [vmem:[%s190 + $0x2b8] sm:$0xff]
        %v688 = vld [vmem:[%s190 + $0x2c0] sm:$0xff]
        %v689 = vld [vmem:[%s190 + $0x2c8] sm:$0xff]
        %v690 = vld [vmem:[%s190 + $0x2d0] sm:$0xff]
        %v691 = vld [vmem:[%s190 + $0x2d8] sm:$0xff]
        %v692 = vld [vmem:[%s190 + $0x2e0] sm:$0xff]
        %v693 = vld [vmem:[%s190 + $0x2e8] sm:$0xf]
        %v694 = vld [vmem:[%s190 + $0x2ec] sm:$0xff]
        %v695 = vld [vmem:[%s190 + $0x2f4] sm:$0xff]
        %v696 = vld [vmem:[%s190 + $0x2fc] sm:$0xff]
        %v697 = vld [vmem:[%s190 + $0x304] sm:$0xff]
        %v698 = vld [vmem:[%s190 + $0x30c] sm:$0xff]
        %v699 = vld [vmem:[%s190 + $0x314] sm:$0xff]
        %v700 = vld [vmem:[%s190 + $0x31c] sm:$0xff]
        %v701 = vld [vmem:[%s190 + $0x324] sm:$0xff]
        %v702 = vld [vmem:[%s190 + $0x32c] sm:$0xf]
        %v703 = vld [vmem:[%s190 + $0x330] sm:$0xff]
        %v704 = vld [vmem:[%s190 + $0x338] sm:$0xff]
        %v705 = vld [vmem:[%s190 + $0x340] sm:$0xff]
        %v706 = vld [vmem:[%s190 + $0x348] sm:$0xff]
        %v707 = vld [vmem:[%s190 + $0x350] sm:$0xff]
        %v708 = vld [vmem:[%s190 + $0x358] sm:$0xff]
        %v709 = vld [vmem:[%s190 + $0x360] sm:$0xff]
        %v710 = vld [vmem:[%s190 + $0x368] sm:$0xff]
        %v711 = vld [vmem:[%s190 + $0x370] sm:$0xf]
        %v712 = vld [vmem:[%s190 + $0x374] sm:$0xff]
        %v713 = vld [vmem:[%s190 + $0x37c] sm:$0xff]
        %v714 = vld [vmem:[%s190 + $0x384] sm:$0xff]
        %v715 = vld [vmem:[%s190 + $0x38c] sm:$0xff]
        %v716 = vld [vmem:[%s190 + $0x394] sm:$0xff]
        %v717 = vld [vmem:[%s190 + $0x39c] sm:$0xff]
        %v718 = vld [vmem:[%s190 + $0x3a4] sm:$0xff]
        %v719 = vld [vmem:[%s190 + $0x3ac] sm:$0xff]
        %v720 = vld [vmem:[%s190 + $0x3b4] sm:$0xf]
        %v721 = vld [vmem:[%s190 + $0x3b8] sm:$0xff]
        %v722 = vld [vmem:[%s190 + $0x3c0] sm:$0xff]
        %v723 = vld [vmem:[%s190 + $0x3c8] sm:$0xff]
        %v724 = vld [vmem:[%s190 + $0x3d0] sm:$0xff]
        %v725 = vld [vmem:[%s190 + $0x3d8] sm:$0xff]
        %v726 = vld [vmem:[%s190 + $0x3e0] sm:$0xff]
        %v727 = vld [vmem:[%s190 + $0x3e8] sm:$0xff]
        %v728 = vld [vmem:[%s190 + $0x3f0] sm:$0xff]
        %v729 = vld [vmem:[%s190 + $0x3f8] sm:$0xf]
        %v730 = vld [vmem:[%s190 + $0x3fc] sm:$0xff]
        %v731 = vld [vmem:[%s190 + $0x404] sm:$0xff]
        %v732 = vld [vmem:[%s190 + $0x40c] sm:$0xff]
        %v733 = vld [vmem:[%s190 + $0x414] sm:$0xff]
        %v734 = vld [vmem:[%s190 + $0x41c] sm:$0xff]
        %v735 = vld [vmem:[%s190 + $0x424] sm:$0xff]
        %v736 = vld [vmem:[%s190 + $0x42c] sm:$0xff]
        %v737 = vld [vmem:[%s190 + $0x434] sm:$0xff]
        %v738 = vld [vmem:[%s190 + $0x43c] sm:$0xf]
        %v739 = vld [vmem:[%s190 + $0x440] sm:$0xff]
        %v740 = vld [vmem:[%s190 + $0x448] sm:$0xff]
        %v741 = vld [vmem:[%s190 + $0x450] sm:$0xff]
        %v742 = vld [vmem:[%s190 + $0x458] sm:$0xff]
        %v743 = vld [vmem:[%s190 + $0x460] sm:$0xff]
        %v744 = vld [vmem:[%s190 + $0x468] sm:$0xff]
        %v745 = vld [vmem:[%s190 + $0x470] sm:$0xff]
        %v746 = vld [vmem:[%s190 + $0x478] sm:$0xff]
        %v747 = vld [vmem:[%s190 + $0x480] sm:$0xf]
        %v748 = vld [vmem:[%s190 + $0x484] sm:$0xff]
        %v749 = vld [vmem:[%s190 + $0x48c] sm:$0xff]
        %v750 = vld [vmem:[%s190 + $0x494] sm:$0xff]
        %v751 = vld [vmem:[%s190 + $0x49c] sm:$0xff]
        %v752 = vld [vmem:[%s190 + $0x4a4] sm:$0xff]
        %v753 = vld [vmem:[%s190 + $0x4ac] sm:$0xff]
        %v754 = vld [vmem:[%s190 + $0x4b4] sm:$0xff]
        %v755 = vld [vmem:[%s190 + $0x4bc] sm:$0xff]
        %v756 = vld [vmem:[%s190 + $0x4c4] sm:$0xf]
        %v757 = vld [vmem:[%s190 + $0x4c8] sm:$0xff]
        %v758 = vld [vmem:[%s190 + $0x4d0] sm:$0xff]
        %v759 = vld [vmem:[%s190 + $0x4d8] sm:$0xff]
        %v760 = vld [vmem:[%s190 + $0x4e0] sm:$0xff]
        %v761 = vld [vmem:[%s190 + $0x4e8] sm:$0xff]
        %v762 = vld [vmem:[%s190 + $0x4f0] sm:$0xff]
        %v763 = vld [vmem:[%s190 + $0x4f8] sm:$0xff]
        %v764 = vld [vmem:[%s190 + $0x500] sm:$0xff]
        %v765 = vld [vmem:[%s190 + $0x508] sm:$0xf]
        %v766 = vld [vmem:[%s190 + $0x50c] sm:$0xff]
        %v767 = vld [vmem:[%s190 + $0x514] sm:$0xff]
        %v768 = vld [vmem:[%s190 + $0x51c] sm:$0xff]
        %v769 = vld [vmem:[%s190 + $0x524] sm:$0xff]
        %v770 = vld [vmem:[%s190 + $0x52c] sm:$0xff]
        %v771 = vld [vmem:[%s190 + $0x534] sm:$0xff]
        %v772 = vld [vmem:[%s190 + $0x53c] sm:$0xff]
        %v773 = vld [vmem:[%s190 + $0x544] sm:$0xff]
        %v774 = vld [vmem:[%s190 + $0x54c] sm:$0xf]
        %v775 = vld [vmem:[%s190 + $0x550] sm:$0xff]
        %v776 = vld [vmem:[%s190 + $0x558] sm:$0xff]
        %v777 = vld [vmem:[%s190 + $0x560] sm:$0xff]
        %v778 = vld [vmem:[%s190 + $0x568] sm:$0xff]
        %v779 = vld [vmem:[%s190 + $0x570] sm:$0xff]
        %v780 = vld [vmem:[%s190 + $0x578] sm:$0xff]
        %v781 = vld [vmem:[%s190 + $0x580] sm:$0xff]
        %v782 = vld [vmem:[%s190 + $0x588] sm:$0xff]
        %v783 = vld [vmem:[%s190 + $0x590] sm:$0xf]
        %v784 = vld [vmem:[%s190 + $0x594] sm:$0xff]
        %v785 = vld [vmem:[%s190 + $0x59c] sm:$0xff]
        %v786 = vld [vmem:[%s190 + $0x5a4] sm:$0xff]
        %v787 = vld [vmem:[%s190 + $0x5ac] sm:$0xff]
        %v788 = vld [vmem:[%s190 + $0x5b4] sm:$0xff]
        %v789 = vld [vmem:[%s190 + $0x5bc] sm:$0xff]
        %v790 = vld [vmem:[%s190 + $0x5c4] sm:$0xff]
        %v791 = vld [vmem:[%s190 + $0x5cc] sm:$0xff]
        %v792 = vld [vmem:[%s190 + $0x5d4] sm:$0xf]
        %v991 = vunpack.c.l.b16 %v595
        %v992 = vunpack.c.h.b16 %v595
        %v993 = vunpack.c.l.b16 %v596
        %v994 = vunpack.c.h.b16 %v596
        %v995 = vunpack.c.l.b16 %v597
        %v996 = vunpack.c.h.b16 %v597
        %v997 = vunpack.c.l.b16 %v598
        %v998 = vunpack.c.h.b16 %v598
        %v999 = vunpack.c.l.b16 %v599
        %v1000 = vunpack.c.h.b16 %v599
        %v1001 = vunpack.c.l.b16 %v600
        %v1002 = vunpack.c.h.b16 %v600
        %v1003 = vunpack.c.l.b16 %v601
        %v1004 = vunpack.c.h.b16 %v601
        %v1005 = vunpack.c.l.b16 %v602
        %v1006 = vunpack.c.h.b16 %v602
        %v1007 = vunpack.c.l.b16 %v603
        %v1008 = vunpack.c.l.b16 %v604
        %v1009 = vunpack.c.h.b16 %v604
        %v1010 = vunpack.c.l.b16 %v605
        %v1011 = vunpack.c.h.b16 %v605
        %v1012 = vunpack.c.l.b16 %v606
        %v1013 = vunpack.c.h.b16 %v606
        %v1014 = vunpack.c.l.b16 %v607
        %v1015 = vunpack.c.h.b16 %v607
        %v1016 = vunpack.c.l.b16 %v608
        %v1017 = vunpack.c.h.b16 %v608
        %v1018 = vunpack.c.l.b16 %v609
        %v1019 = vunpack.c.h.b16 %v609
        %v1020 = vunpack.c.l.b16 %v610
        %v1021 = vunpack.c.h.b16 %v610
        %v1022 = vunpack.c.l.b16 %v611
        %v1023 = vunpack.c.h.b16 %v611
        %v1024 = vunpack.c.l.b16 %v612
        %v1025 = vunpack.c.l.b16 %v613
        %v1026 = vunpack.c.h.b16 %v613
        %v1027 = vunpack.c.l.b16 %v614
        %v1028 = vunpack.c.h.b16 %v614
        %v1029 = vunpack.c.l.b16 %v615
        %v1030 = vunpack.c.h.b16 %v615
        %v1031 = vunpack.c.l.b16 %v616
        %v1032 = vunpack.c.h.b16 %v616
        %v1033 = vunpack.c.l.b16 %v617
        %v1034 = vunpack.c.h.b16 %v617
        %v1035 = vunpack.c.l.b16 %v618
        %v1036 = vunpack.c.h.b16 %v618
        %v1037 = vunpack.c.l.b16 %v619
        %v1038 = vunpack.c.h.b16 %v619
        %v1039 = vunpack.c.l.b16 %v620
        %v1040 = vunpack.c.h.b16 %v620
        %v1041 = vunpack.c.l.b16 %v621
        %v1042 = vunpack.c.l.b16 %v622
        %v1043 = vunpack.c.h.b16 %v622
        %v1044 = vunpack.c.l.b16 %v623
        %v1045 = vunpack.c.h.b16 %v623
        %v1046 = vunpack.c.l.b16 %v624
        %v1047 = vunpack.c.h.b16 %v624
        %v1048 = vunpack.c.l.b16 %v625
        %v1049 = vunpack.c.h.b16 %v625
        %v1050 = vunpack.c.l.b16 %v626
        %v1051 = vunpack.c.h.b16 %v626
        %v1052 = vunpack.c.l.b16 %v627
        %v1053 = vunpack.c.h.b16 %v627
        %v1054 = vunpack.c.l.b16 %v628
        %v1055 = vunpack.c.h.b16 %v628
        %v1056 = vunpack.c.l.b16 %v629
        %v1057 = vunpack.c.h.b16 %v629
        %v1058 = vunpack.c.l.b16 %v630
        %v1059 = vunpack.c.l.b16 %v631
        %v1060 = vunpack.c.h.b16 %v631
        %v1061 = vunpack.c.l.b16 %v632
        %v1062 = vunpack.c.h.b16 %v632
        %v1063 = vunpack.c.l.b16 %v633
        %v1064 = vunpack.c.h.b16 %v633
        %v1065 = vunpack.c.l.b16 %v634
        %v1066 = vunpack.c.h.b16 %v634
        %v1067 = vunpack.c.l.b16 %v635
        %v1068 = vunpack.c.h.b16 %v635
        %v1069 = vunpack.c.l.b16 %v636
        %v1070 = vunpack.c.h.b16 %v636
        %v1071 = vunpack.c.l.b16 %v637
        %v1072 = vunpack.c.h.b16 %v637
        %v1073 = vunpack.c.l.b16 %v638
        %v1074 = vunpack.c.h.b16 %v638
        %v1075 = vunpack.c.l.b16 %v639
        %v1076 = vunpack.c.l.b16 %v640
        %v1077 = vunpack.c.h.b16 %v640
        %v1078 = vunpack.c.l.b16 %v641
        %v1079 = vunpack.c.h.b16 %v641
        %v1080 = vunpack.c.l.b16 %v642
        %v1081 = vunpack.c.h.b16 %v642
        %v1082 = vunpack.c.l.b16 %v643
        %v1083 = vunpack.c.h.b16 %v643
        %v1084 = vunpack.c.l.b16 %v644
        %v1085 = vunpack.c.h.b16 %v644
        %v1086 = vunpack.c.l.b16 %v645
        %v1087 = vunpack.c.h.b16 %v645
        %v1088 = vunpack.c.l.b16 %v646
        %v1089 = vunpack.c.h.b16 %v646
        %v1090 = vunpack.c.l.b16 %v647
        %v1091 = vunpack.c.h.b16 %v647
        %v1092 = vunpack.c.l.b16 %v648
        %v1093 = vunpack.c.l.b16 %v649
        %v1094 = vunpack.c.h.b16 %v649
        %v1095 = vunpack.c.l.b16 %v650
        %v1096 = vunpack.c.h.b16 %v650
        %v1097 = vunpack.c.l.b16 %v651
        %v1098 = vunpack.c.h.b16 %v651
        %v1099 = vunpack.c.l.b16 %v652
        %v1100 = vunpack.c.h.b16 %v652
        %v1101 = vunpack.c.l.b16 %v653
        %v1102 = vunpack.c.h.b16 %v653
        %v1103 = vunpack.c.l.b16 %v654
        %v1104 = vunpack.c.h.b16 %v654
        %v1105 = vunpack.c.l.b16 %v655
        %v1106 = vunpack.c.h.b16 %v655
        %v1107 = vunpack.c.l.b16 %v656
        %v1108 = vunpack.c.h.b16 %v656
        %v1109 = vunpack.c.l.b16 %v657
        %v1110 = vunpack.c.l.b16 %v658
        %v1111 = vunpack.c.h.b16 %v658
        %v1112 = vunpack.c.l.b16 %v659
        %v1113 = vunpack.c.h.b16 %v659
        %v1114 = vunpack.c.l.b16 %v660
        %v1115 = vunpack.c.h.b16 %v660
        %v1116 = vunpack.c.l.b16 %v661
        %v1117 = vunpack.c.h.b16 %v661
        %v1118 = vunpack.c.l.b16 %v662
        %v1119 = vunpack.c.h.b16 %v662
        %v1120 = vunpack.c.l.b16 %v663
        %v1121 = vunpack.c.h.b16 %v663
        %v1122 = vunpack.c.l.b16 %v664
        %v1123 = vunpack.c.h.b16 %v664
        %v1124 = vunpack.c.l.b16 %v665
        %v1125 = vunpack.c.h.b16 %v665
        %v1126 = vunpack.c.l.b16 %v666
        %v1127 = vunpack.c.l.b16 %v667
        %v1128 = vunpack.c.h.b16 %v667
        %v1129 = vunpack.c.l.b16 %v668
        %v1130 = vunpack.c.h.b16 %v668
        %v1131 = vunpack.c.l.b16 %v669
        %v1132 = vunpack.c.h.b16 %v669
        %v1133 = vunpack.c.l.b16 %v670
        %v1134 = vunpack.c.h.b16 %v670
        %v1135 = vunpack.c.l.b16 %v671
        %v1136 = vunpack.c.h.b16 %v671
        %v1137 = vunpack.c.l.b16 %v672
        %v1138 = vunpack.c.h.b16 %v672
        %v1139 = vunpack.c.l.b16 %v673
        %v1140 = vunpack.c.h.b16 %v673
        %v1141 = vunpack.c.l.b16 %v674
        %v1142 = vunpack.c.h.b16 %v674
        %v1143 = vunpack.c.l.b16 %v675
        %v1144 = vunpack.c.l.b16 %v676
        %v1145 = vunpack.c.h.b16 %v676
        %v1146 = vunpack.c.l.b16 %v677
        %v1147 = vunpack.c.h.b16 %v677
        %v1148 = vunpack.c.l.b16 %v678
        %v1149 = vunpack.c.h.b16 %v678
        %v1150 = vunpack.c.l.b16 %v679
        %v1151 = vunpack.c.h.b16 %v679
        %v1152 = vunpack.c.l.b16 %v680
        %v1153 = vunpack.c.h.b16 %v680
        %v1154 = vunpack.c.l.b16 %v681
        %v1155 = vunpack.c.h.b16 %v681
        %v1156 = vunpack.c.l.b16 %v682
        %v1157 = vunpack.c.h.b16 %v682
        %v1158 = vunpack.c.l.b16 %v683
        %v1159 = vunpack.c.h.b16 %v683
        %v1160 = vunpack.c.l.b16 %v684
        %v1161 = vunpack.c.l.b16 %v685
        %v1162 = vunpack.c.h.b16 %v685
        %v1163 = vunpack.c.l.b16 %v686
        %v1164 = vunpack.c.h.b16 %v686
        %v1165 = vunpack.c.l.b16 %v687
        %v1166 = vunpack.c.h.b16 %v687
        %v1167 = vunpack.c.l.b16 %v688
        %v1168 = vunpack.c.h.b16 %v688
        %v1169 = vunpack.c.l.b16 %v689
        %v1170 = vunpack.c.h.b16 %v689
        %v1171 = vunpack.c.l.b16 %v690
        %v1172 = vunpack.c.h.b16 %v690
        %v1173 = vunpack.c.l.b16 %v691
        %v1174 = vunpack.c.h.b16 %v691
        %v1175 = vunpack.c.l.b16 %v692
        %v1176 = vunpack.c.h.b16 %v692
        %v1177 = vunpack.c.l.b16 %v693
        %v1178 = vunpack.c.l.b16 %v694
        %v1179 = vunpack.c.h.b16 %v694
        %v1180 = vunpack.c.l.b16 %v695
        %v1181 = vunpack.c.h.b16 %v695
        %v1182 = vunpack.c.l.b16 %v696
        %v1183 = vunpack.c.h.b16 %v696
        %v1184 = vunpack.c.l.b16 %v697
        %v1185 = vunpack.c.h.b16 %v697
        %v1186 = vunpack.c.l.b16 %v698
        %v1187 = vunpack.c.h.b16 %v698
        %v1188 = vunpack.c.l.b16 %v699
        %v1189 = vunpack.c.h.b16 %v699
        %v1190 = vunpack.c.l.b16 %v700
        %v1191 = vunpack.c.h.b16 %v700
        %v1192 = vunpack.c.l.b16 %v701
        %v1193 = vunpack.c.h.b16 %v701
        %v1194 = vunpack.c.l.b16 %v702
        %v1195 = vunpack.c.l.b16 %v703
        %v1196 = vunpack.c.h.b16 %v703
        %v1197 = vunpack.c.l.b16 %v704
        %v1198 = vunpack.c.h.b16 %v704
        %v1199 = vunpack.c.l.b16 %v705
        %v1200 = vunpack.c.h.b16 %v705
        %v1201 = vunpack.c.l.b16 %v706
        %v1202 = vunpack.c.h.b16 %v706
        %v1203 = vunpack.c.l.b16 %v707
        %v1204 = vunpack.c.h.b16 %v707
        %v1205 = vunpack.c.l.b16 %v708
        %v1206 = vunpack.c.h.b16 %v708
        %v1207 = vunpack.c.l.b16 %v709
        %v1208 = vunpack.c.h.b16 %v709
        %v1209 = vunpack.c.l.b16 %v710
        %v1210 = vunpack.c.h.b16 %v710
        %v1211 = vunpack.c.l.b16 %v711
        %v1212 = vunpack.c.l.b16 %v712
        %v1213 = vunpack.c.h.b16 %v712
        %v1214 = vunpack.c.l.b16 %v713
        %v1215 = vunpack.c.h.b16 %v713
        %v1216 = vunpack.c.l.b16 %v714
        %v1217 = vunpack.c.h.b16 %v714
        %v1218 = vunpack.c.l.b16 %v715
        %v1219 = vunpack.c.h.b16 %v715
        %v1220 = vunpack.c.l.b16 %v716
        %v1221 = vunpack.c.h.b16 %v716
        %v1222 = vunpack.c.l.b16 %v717
        %v1223 = vunpack.c.h.b16 %v717
        %v1224 = vunpack.c.l.b16 %v718
        %v1225 = vunpack.c.h.b16 %v718
        %v1226 = vunpack.c.l.b16 %v719
        %v1227 = vunpack.c.h.b16 %v719
        %v1228 = vunpack.c.l.b16 %v720
        %v1229 = vunpack.c.l.b16 %v721
        %v1230 = vunpack.c.h.b16 %v721
        %v1231 = vunpack.c.l.b16 %v722
        %v1232 = vunpack.c.h.b16 %v722
        %v1233 = vunpack.c.l.b16 %v723
        %v1234 = vunpack.c.h.b16 %v723
        %v1235 = vunpack.c.l.b16 %v724
        %v1236 = vunpack.c.h.b16 %v724
        %v1237 = vunpack.c.l.b16 %v725
        %v1238 = vunpack.c.h.b16 %v725
        %v1239 = vunpack.c.l.b16 %v726
        %v1240 = vunpack.c.h.b16 %v726
        %v1241 = vunpack.c.l.b16 %v727
        %v1242 = vunpack.c.h.b16 %v727
        %v1243 = vunpack.c.l.b16 %v728
        %v1244 = vunpack.c.h.b16 %v728
        %v1245 = vunpack.c.l.b16 %v729
        %v1246 = vunpack.c.l.b16 %v730
        %v1247 = vunpack.c.h.b16 %v730
        %v1248 = vunpack.c.l.b16 %v731
        %v1249 = vunpack.c.h.b16 %v731
        %v1250 = vunpack.c.l.b16 %v732
        %v1251 = vunpack.c.h.b16 %v732
        %v1252 = vunpack.c.l.b16 %v733
        %v1253 = vunpack.c.h.b16 %v733
        %v1254 = vunpack.c.l.b16 %v734
        %v1255 = vunpack.c.h.b16 %v734
        %v1256 = vunpack.c.l.b16 %v735
        %v1257 = vunpack.c.h.b16 %v735
        %v1258 = vunpack.c.l.b16 %v736
        %v1259 = vunpack.c.h.b16 %v736
        %v1260 = vunpack.c.l.b16 %v737
        %v1261 = vunpack.c.h.b16 %v737
        %v1262 = vunpack.c.l.b16 %v738
        %v1263 = vunpack.c.l.b16 %v739
        %v1264 = vunpack.c.h.b16 %v739
        %v1265 = vunpack.c.l.b16 %v740
        %v1266 = vunpack.c.h.b16 %v740
        %v1267 = vunpack.c.l.b16 %v741
        %v1268 = vunpack.c.h.b16 %v741
        %v1269 = vunpack.c.l.b16 %v742
        %v1270 = vunpack.c.h.b16 %v742
        %v1271 = vunpack.c.l.b16 %v743
        %v1272 = vunpack.c.h.b16 %v743
        %v1273 = vunpack.c.l.b16 %v744
        %v1274 = vunpack.c.h.b16 %v744
        %v1275 = vunpack.c.l.b16 %v745
        %v1276 = vunpack.c.h.b16 %v745
        %v1277 = vunpack.c.l.b16 %v746
        %v1278 = vunpack.c.h.b16 %v746
        %v1279 = vunpack.c.l.b16 %v747
        %v1280 = vunpack.c.l.b16 %v748
        %v1281 = vunpack.c.h.b16 %v748
        %v1282 = vunpack.c.l.b16 %v749
        %v1283 = vunpack.c.h.b16 %v749
        %v1284 = vunpack.c.l.b16 %v750
        %v1285 = vunpack.c.h.b16 %v750
        %v1286 = vunpack.c.l.b16 %v751
        %v1287 = vunpack.c.h.b16 %v751
        %v1288 = vunpack.c.l.b16 %v752
        %v1289 = vunpack.c.h.b16 %v752
        %v1290 = vunpack.c.l.b16 %v753
        %v1291 = vunpack.c.h.b16 %v753
        %v1292 = vunpack.c.l.b16 %v754
        %v1293 = vunpack.c.h.b16 %v754
        %v1294 = vunpack.c.l.b16 %v755
        %v1295 = vunpack.c.h.b16 %v755
        %v1296 = vunpack.c.l.b16 %v756
        %v1297 = vunpack.c.l.b16 %v757
        %v1298 = vunpack.c.h.b16 %v757
        %v1299 = vunpack.c.l.b16 %v758
        %v1300 = vunpack.c.h.b16 %v758
        %v1301 = vunpack.c.l.b16 %v759
        %v1302 = vunpack.c.h.b16 %v759
        %v1303 = vunpack.c.l.b16 %v760
        %v1304 = vunpack.c.h.b16 %v760
        %v1305 = vunpack.c.l.b16 %v761
        %v1306 = vunpack.c.h.b16 %v761
        %v1307 = vunpack.c.l.b16 %v762
        %v1308 = vunpack.c.h.b16 %v762
        %v1309 = vunpack.c.l.b16 %v763
        %v1310 = vunpack.c.h.b16 %v763
        %v1311 = vunpack.c.l.b16 %v764
        %v1312 = vunpack.c.h.b16 %v764
        %v1313 = vunpack.c.l.b16 %v765
        %v1314 = vunpack.c.l.b16 %v766
        %v1315 = vunpack.c.h.b16 %v766
        %v1316 = vunpack.c.l.b16 %v767
        %v1317 = vunpack.c.h.b16 %v767
        %v1318 = vunpack.c.l.b16 %v768
        %v1319 = vunpack.c.h.b16 %v768
        %v1320 = vunpack.c.l.b16 %v769
        %v1321 = vunpack.c.h.b16 %v769
        %v1322 = vunpack.c.l.b16 %v770
        %v1323 = vunpack.c.h.b16 %v770
        %v1324 = vunpack.c.l.b16 %v771
        %v1325 = vunpack.c.h.b16 %v771
        %v1326 = vunpack.c.l.b16 %v772
        %v1327 = vunpack.c.h.b16 %v772
        %v1328 = vunpack.c.l.b16 %v773
        %v1329 = vunpack.c.h.b16 %v773
        %v1330 = vunpack.c.l.b16 %v774
        %v1331 = vunpack.c.l.b16 %v775
        %v1332 = vunpack.c.h.b16 %v775
        %v1333 = vunpack.c.l.b16 %v776
        %v1334 = vunpack.c.h.b16 %v776
        %v1335 = vunpack.c.l.b16 %v777
        %v1336 = vunpack.c.h.b16 %v777
        %v1337 = vunpack.c.l.b16 %v778
        %v1338 = vunpack.c.h.b16 %v778
        %v1339 = vunpack.c.l.b16 %v779
        %v1340 = vunpack.c.h.b16 %v779
        %v1341 = vunpack.c.l.b16 %v780
        %v1342 = vunpack.c.h.b16 %v780
        %v1343 = vunpack.c.l.b16 %v781
        %v1344 = vunpack.c.h.b16 %v781
        %v1345 = vunpack.c.l.b16 %v782
        %v1346 = vunpack.c.h.b16 %v782
        %v1347 = vunpack.c.l.b16 %v783
        %v1348 = vunpack.c.l.b16 %v784
        %v1349 = vunpack.c.h.b16 %v784
        %v1350 = vunpack.c.l.b16 %v785
        %v1351 = vunpack.c.h.b16 %v785
        %v1352 = vunpack.c.l.b16 %v786
        %v1353 = vunpack.c.h.b16 %v786
        %v1354 = vunpack.c.l.b16 %v787
        %v1355 = vunpack.c.h.b16 %v787
        %v1356 = vunpack.c.l.b16 %v788
        %v1357 = vunpack.c.h.b16 %v788
        %v1358 = vunpack.c.l.b16 %v789
        %v1359 = vunpack.c.h.b16 %v789
        %v1360 = vunpack.c.l.b16 %v790
        %v1361 = vunpack.c.h.b16 %v790
        %v1362 = vunpack.c.l.b16 %v791
        %v1363 = vunpack.c.h.b16 %v791
        %v1364 = vunpack.c.l.b16 %v792
        %v1365 = vpack.c.b16 %v1008, %v991
        %v1366 = vpack.c.b16 %v1009, %v992
        %v1367 = vpack.c.b16 %v1010, %v993
        %v1368 = vpack.c.b16 %v1011, %v994
        %v1369 = vpack.c.b16 %v1012, %v995
        %v1370 = vpack.c.b16 %v1013, %v996
        %v1371 = vpack.c.b16 %v1014, %v997
        %v1372 = vpack.c.b16 %v1015, %v998
        %v1373 = vpack.c.b16 %v1016, %v999
        %v1374 = vpack.c.b16 %v1017, %v1000
        %v1375 = vpack.c.b16 %v1018, %v1001
        %v1376 = vpack.c.b16 %v1019, %v1002
        %v1377 = vpack.c.b16 %v1020, %v1003
        %v1378 = vpack.c.b16 %v1021, %v1004
        %v1379 = vpack.c.b16 %v1022, %v1005
        %v1380 = vpack.c.b16 %v1023, %v1006
        %v1381 = vpack.c.b16 %v1024, %v1007
        %v1382 = vpack.c.b16 %v1042, %v1025
        %v1383 = vpack.c.b16 %v1043, %v1026
        %v1384 = vpack.c.b16 %v1044, %v1027
        %v1385 = vpack.c.b16 %v1045, %v1028
        %v1386 = vpack.c.b16 %v1046, %v1029
        %v1387 = vpack.c.b16 %v1047, %v1030
        %v1388 = vpack.c.b16 %v1048, %v1031
        %v1389 = vpack.c.b16 %v1049, %v1032
        %v1390 = vpack.c.b16 %v1050, %v1033
        %v1391 = vpack.c.b16 %v1051, %v1034
        %v1392 = vpack.c.b16 %v1052, %v1035
        %v1393 = vpack.c.b16 %v1053, %v1036
        %v1394 = vpack.c.b16 %v1054, %v1037
        %v1395 = vpack.c.b16 %v1055, %v1038
        %v1396 = vpack.c.b16 %v1056, %v1039
        %v1397 = vpack.c.b16 %v1057, %v1040
        %v1398 = vpack.c.b16 %v1058, %v1041
        %v1399 = vpack.c.b16 %v1076, %v1059
        %v1400 = vpack.c.b16 %v1077, %v1060
        %v1401 = vpack.c.b16 %v1078, %v1061
        %v1402 = vpack.c.b16 %v1079, %v1062
        %v1403 = vpack.c.b16 %v1080, %v1063
        %v1404 = vpack.c.b16 %v1081, %v1064
        %v1405 = vpack.c.b16 %v1082, %v1065
        %v1406 = vpack.c.b16 %v1083, %v1066
        %v1407 = vpack.c.b16 %v1084, %v1067
        %v1408 = vpack.c.b16 %v1085, %v1068
        %v1409 = vpack.c.b16 %v1086, %v1069
        %v1410 = vpack.c.b16 %v1087, %v1070
        %v1411 = vpack.c.b16 %v1088, %v1071
        %v1412 = vpack.c.b16 %v1089, %v1072
        %v1413 = vpack.c.b16 %v1090, %v1073
        %v1414 = vpack.c.b16 %v1091, %v1074
        %v1415 = vpack.c.b16 %v1092, %v1075
        %v1416 = vpack.c.b16 %v1110, %v1093
        %v1417 = vpack.c.b16 %v1111, %v1094
        %v1418 = vpack.c.b16 %v1112, %v1095
        %v1419 = vpack.c.b16 %v1113, %v1096
        %v1420 = vpack.c.b16 %v1114, %v1097
        %v1421 = vpack.c.b16 %v1115, %v1098
        %v1422 = vpack.c.b16 %v1116, %v1099
        %v1423 = vpack.c.b16 %v1117, %v1100
        %v1424 = vpack.c.b16 %v1118, %v1101
        %v1425 = vpack.c.b16 %v1119, %v1102
        %v1426 = vpack.c.b16 %v1120, %v1103
        %v1427 = vpack.c.b16 %v1121, %v1104
        %v1428 = vpack.c.b16 %v1122, %v1105
        %v1429 = vpack.c.b16 %v1123, %v1106
        %v1430 = vpack.c.b16 %v1124, %v1107
        %v1431 = vpack.c.b16 %v1125, %v1108
        %v1432 = vpack.c.b16 %v1126, %v1109
        %v1433 = vpack.c.b16 %v1144, %v1127
        %v1434 = vpack.c.b16 %v1145, %v1128
        %v1435 = vpack.c.b16 %v1146, %v1129
        %v1436 = vpack.c.b16 %v1147, %v1130
        %v1437 = vpack.c.b16 %v1148, %v1131
        %v1438 = vpack.c.b16 %v1149, %v1132
        %v1439 = vpack.c.b16 %v1150, %v1133
        %v1440 = vpack.c.b16 %v1151, %v1134
        %v1441 = vpack.c.b16 %v1152, %v1135
        %v1442 = vpack.c.b16 %v1153, %v1136
        %v1443 = vpack.c.b16 %v1154, %v1137
        %v1444 = vpack.c.b16 %v1155, %v1138
        %v1445 = vpack.c.b16 %v1156, %v1139
        %v1446 = vpack.c.b16 %v1157, %v1140
        %v1447 = vpack.c.b16 %v1158, %v1141
        %v1448 = vpack.c.b16 %v1159, %v1142
        %v1449 = vpack.c.b16 %v1160, %v1143
        %v1450 = vpack.c.b16 %v1178, %v1161
        %v1451 = vpack.c.b16 %v1179, %v1162
        %v1452 = vpack.c.b16 %v1180, %v1163
        %v1453 = vpack.c.b16 %v1181, %v1164
        %v1454 = vpack.c.b16 %v1182, %v1165
        %v1455 = vpack.c.b16 %v1183, %v1166
        %v1456 = vpack.c.b16 %v1184, %v1167
        %v1457 = vpack.c.b16 %v1185, %v1168
        %v1458 = vpack.c.b16 %v1186, %v1169
        %v1459 = vpack.c.b16 %v1187, %v1170
        %v1460 = vpack.c.b16 %v1188, %v1171
        %v1461 = vpack.c.b16 %v1189, %v1172
        %v1462 = vpack.c.b16 %v1190, %v1173
        %v1463 = vpack.c.b16 %v1191, %v1174
        %v1464 = vpack.c.b16 %v1192, %v1175
        %v1465 = vpack.c.b16 %v1193, %v1176
        %v1466 = vpack.c.b16 %v1194, %v1177
        %v1467 = vpack.c.b16 %v1212, %v1195
        %v1468 = vpack.c.b16 %v1213, %v1196
        %v1469 = vpack.c.b16 %v1214, %v1197
        %v1470 = vpack.c.b16 %v1215, %v1198
        %v1471 = vpack.c.b16 %v1216, %v1199
        %v1472 = vpack.c.b16 %v1217, %v1200
        %v1473 = vpack.c.b16 %v1218, %v1201
        %v1474 = vpack.c.b16 %v1219, %v1202
        %v1475 = vpack.c.b16 %v1220, %v1203
        %v1476 = vpack.c.b16 %v1221, %v1204
        %v1477 = vpack.c.b16 %v1222, %v1205
        %v1478 = vpack.c.b16 %v1223, %v1206
        %v1479 = vpack.c.b16 %v1224, %v1207
        %v1480 = vpack.c.b16 %v1225, %v1208
        %v1481 = vpack.c.b16 %v1226, %v1209
        %v1482 = vpack.c.b16 %v1227, %v1210
        %v1483 = vpack.c.b16 %v1228, %v1211
        %v1484 = vpack.c.b16 %v1246, %v1229
        %v1485 = vpack.c.b16 %v1247, %v1230
        %v1486 = vpack.c.b16 %v1248, %v1231
        %v1487 = vpack.c.b16 %v1249, %v1232
        %v1488 = vpack.c.b16 %v1250, %v1233
        %v1489 = vpack.c.b16 %v1251, %v1234
        %v1490 = vpack.c.b16 %v1252, %v1235
        %v1491 = vpack.c.b16 %v1253, %v1236
        %v1492 = vpack.c.b16 %v1254, %v1237
        %v1493 = vpack.c.b16 %v1255, %v1238
        %v1494 = vpack.c.b16 %v1256, %v1239
        %v1495 = vpack.c.b16 %v1257, %v1240
        %v1496 = vpack.c.b16 %v1258, %v1241
        %v1497 = vpack.c.b16 %v1259, %v1242
        %v1498 = vpack.c.b16 %v1260, %v1243
        %v1499 = vpack.c.b16 %v1261, %v1244
        %v1500 = vpack.c.b16 %v1262, %v1245
        %v1501 = vpack.c.b16 %v1280, %v1263
        %v1502 = vpack.c.b16 %v1281, %v1264
        %v1503 = vpack.c.b16 %v1282, %v1265
        %v1504 = vpack.c.b16 %v1283, %v1266
        %v1505 = vpack.c.b16 %v1284, %v1267
        %v1506 = vpack.c.b16 %v1285, %v1268
        %v1507 = vpack.c.b16 %v1286, %v1269
        %v1508 = vpack.c.b16 %v1287, %v1270
        %v1509 = vpack.c.b16 %v1288, %v1271
        %v1510 = vpack.c.b16 %v1289, %v1272
        %v1511 = vpack.c.b16 %v1290, %v1273
        %v1512 = vpack.c.b16 %v1291, %v1274
        %v1513 = vpack.c.b16 %v1292, %v1275
        %v1514 = vpack.c.b16 %v1293, %v1276
        %v1515 = vpack.c.b16 %v1294, %v1277
        %v1516 = vpack.c.b16 %v1295, %v1278
        %v1517 = vpack.c.b16 %v1296, %v1279
        %v1518 = vpack.c.b16 %v1314, %v1297
        %v1519 = vpack.c.b16 %v1315, %v1298
        %v1520 = vpack.c.b16 %v1316, %v1299
        %v1521 = vpack.c.b16 %v1317, %v1300
        %v1522 = vpack.c.b16 %v1318, %v1301
        %v1523 = vpack.c.b16 %v1319, %v1302
        %v1524 = vpack.c.b16 %v1320, %v1303
        %v1525 = vpack.c.b16 %v1321, %v1304
        %v1526 = vpack.c.b16 %v1322, %v1305
        %v1527 = vpack.c.b16 %v1323, %v1306
        %v1528 = vpack.c.b16 %v1324, %v1307
        %v1529 = vpack.c.b16 %v1325, %v1308
        %v1530 = vpack.c.b16 %v1326, %v1309
        %v1531 = vpack.c.b16 %v1327, %v1310
        %v1532 = vpack.c.b16 %v1328, %v1311
        %v1533 = vpack.c.b16 %v1329, %v1312
        %v1534 = vpack.c.b16 %v1330, %v1313
        %v1535 = vpack.c.b16 %v1348, %v1331
        %v1536 = vpack.c.b16 %v1349, %v1332
        %v1537 = vpack.c.b16 %v1350, %v1333
        %v1538 = vpack.c.b16 %v1351, %v1334
        %v1539 = vpack.c.b16 %v1352, %v1335
        %v1540 = vpack.c.b16 %v1353, %v1336
        %v1541 = vpack.c.b16 %v1354, %v1337
        %v1542 = vpack.c.b16 %v1355, %v1338
        %v1543 = vpack.c.b16 %v1356, %v1339
        %v1544 = vpack.c.b16 %v1357, %v1340
        %v1545 = vpack.c.b16 %v1358, %v1341
        %v1546 = vpack.c.b16 %v1359, %v1342
        %v1547 = vpack.c.b16 %v1360, %v1343
        %v1548 = vpack.c.b16 %v1361, %v1344
        %v1549 = vpack.c.b16 %v1362, %v1345
        %v1550 = vpack.c.b16 %v1363, %v1346
        %v1551 = vpack.c.b16 %v1364, %v1347
        %vm1728 = vcmask 130048
        %v1730 = vsel %vm1728, %v1381, 0
        %v1733 = vsel %vm1728, %v1398, 0
        %v1736 = vsel %vm1728, %v1415, 0
        %v1739 = vsel %vm1728, %v1432, 0
        %v1742 = vsel %vm1728, %v1449, 0
        %v1745 = vsel %vm1728, %v1466, 0
        %v1748 = vsel %vm1728, %v1483, 0
        %v1751 = vsel %vm1728, %v1500, 0
        %v1754 = vsel %vm1728, %v1517, 0
        %v1757 = vsel %vm1728, %v1534, 0
        %v1760 = vsel %vm1728, %v1551, 0
        %1762 = vmatprep.subr.bf16.mxu0 0
        %1763 = vmatpush1.bf16.msra.mxu0 %v466
        %1764 = vmatprep.subr.bf16.mxu0 0
        %1765 = vmatpush1.bf16.msra.mxu0 %v467
        %1766 = vmatprep.subr.bf16.mxu0 0
        %1767 = vmatpush1.bf16.msra.mxu0 %v468
        %1768 = vmatprep.subr.bf16.mxu0 0
        %1769 = vmatpush1.bf16.msra.mxu0 %v469
        %1770 = vmatprep.subr.bf16.mxu0 0
        %1771 = vmatpush1.bf16.msra.mxu0 %v470
        %1772 = vmatprep.subr.bf16.mxu0 0
        %1773 = vmatpush1.bf16.msra.mxu0 %v471
        %1774 = vmatprep.subr.bf16.mxu0 0
        %1775 = vmatpush1.bf16.msra.mxu0 %v472
        %1776 = vmatprep.subr.bf16.mxu0 0
        %1777 = vmatpush1.bf16.msra.mxu0 %v473
        %1778 = vmatprep.subr.bf16.mxu0 0
        %1779 = vmatpush1.bf16.msra.mxu0 %v474
        %1780 = vmatprep.subr.bf16.mxu0 0
        %1781 = vmatpush1.bf16.msra.mxu0 %v475
        %1782 = vmatprep.subr.bf16.mxu0 0
        %1783 = vmatpush1.bf16.msra.mxu0 %v476
        %1784 = vmatprep.subr.bf16.mxu0 0
        %1785 = vmatpush1.bf16.msra.mxu0 %v477
        %1786 = vmatprep.subr.bf16.mxu0 0
        %1787 = vmatpush1.bf16.msra.mxu0 %v478
        %1788 = vmatprep.subr.bf16.mxu0 0
        %1789 = vmatpush1.bf16.msra.mxu0 %v479
        %1790 = vmatprep.subr.bf16.mxu0 0
        %1791 = vmatpush1.bf16.msra.mxu0 %v480
        %1792 = vmatprep.subr.bf16.mxu0 0
        %1793 = vmatpush1.bf16.msra.mxu0 %v481
        %1794 = vmatprep.mubr.bf16.mxu0 %v1366
        %1795 = vmatmul.mubr.bf16.gmra.mrb[0].mxu0 %v1365
        %v1796 = vpop.f32.mrb[0].mxu0
        %v1797 = vadd.f32 0.0, %v1796
        %v1798 = vpop.f32.mrb[0].mxu0
        %v1799 = vpop.f32.mrb[0].mxu0
        %v1800 = vadd.f32 0.0, %v1799
        %v1801 = vpop.f32.mrb[0].mxu0
        %1802 = vmatprep.mubr.bf16.mxu0 %v1383
        %1803 = vmatmul.mubr.bf16.gmra.mrb[0].mxu0 %v1382
        %v1804 = vpop.f32.mrb[0].mxu0
        %v1805 = vadd.f32 0.0, %v1804
        %v1806 = vpop.f32.mrb[0].mxu0
        %v1807 = vpop.f32.mrb[0].mxu0
        %v1808 = vadd.f32 0.0, %v1807
        %v1809 = vpop.f32.mrb[0].mxu0
        %1810 = vmatprep.mubr.bf16.mxu0 %v1400
        %1811 = vmatmul.mubr.bf16.gmra.mrb[0].mxu0 %v1399
        %v1812 = vpop.f32.mrb[0].mxu0
        %v1813 = vadd.f32 0.0, %v1812
        %v1814 = vpop.f32.mrb[0].mxu0
        %v1815 = vpop.f32.mrb[0].mxu0
        %v1816 = vadd.f32 0.0, %v1815
        %v1817 = vpop.f32.mrb[0].mxu0
        %1818 = vmatprep.mubr.bf16.mxu0 %v1417
        %1819 = vmatmul.mubr.bf16.gmra.mrb[0].mxu0 %v1416
        %v1820 = vpop.f32.mrb[0].mxu0
        %v1821 = vadd.f32 0.0, %v1820
        %v1822 = vpop.f32.mrb[0].mxu0
        %v1823 = vpop.f32.mrb[0].mxu0
        %v1824 = vadd.f32 0.0, %v1823
        %v1825 = vpop.f32.mrb[0].mxu0
        %1826 = vmatprep.mubr.bf16.mxu0 %v1434
        %1827 = vmatmul.mubr.bf16.gmra.mrb[0].mxu0 %v1433
        %v1828 = vpop.f32.mrb[0].mxu0
        %v1829 = vadd.f32 0.0, %v1828
        %v1830 = vpop.f32.mrb[0].mxu0
        %v1831 = vpop.f32.mrb[0].mxu0
        %v1832 = vadd.f32 0.0, %v1831
        %v1833 = vpop.f32.mrb[0].mxu0
        %1834 = vmatprep.mubr.bf16.mxu0 %v1451
        %1835 = vmatmul.mubr.bf16.gmra.mrb[0].mxu0 %v1450
        %v1836 = vpop.f32.mrb[0].mxu0
        %v1837 = vadd.f32 0.0, %v1836
        %v1838 = vpop.f32.mrb[0].mxu0
        %v1839 = vpop.f32.mrb[0].mxu0
        %v1840 = vadd.f32 0.0, %v1839
        %v1841 = vpop.f32.mrb[0].mxu0
        %1842 = vmatprep.mubr.bf16.mxu0 %v1468
        %1843 = vmatmul.mubr.bf16.gmra.mrb[0].mxu0 %v1467
        %v1844 = vpop.f32.mrb[0].mxu0
        %v1845 = vadd.f32 0.0, %v1844
        %v1846 = vpop.f32.mrb[0].mxu0
        %v1847 = vpop.f32.mrb[0].mxu0
        %v1848 = vadd.f32 0.0, %v1847
        %v1849 = vpop.f32.mrb[0].mxu0
        %1850 = vmatprep.mubr.bf16.mxu0 %v1485
        %1851 = vmatmul.mubr.bf16.gmra.mrb[0].mxu0 %v1484
        %v1852 = vpop.f32.mrb[0].mxu0
        %v1853 = vadd.f32 0.0, %v1852
        %v1854 = vpop.f32.mrb[0].mxu0
        %v1855 = vpop.f32.mrb[0].mxu0
        %v1856 = vadd.f32 0.0, %v1855
        %v1857 = vpop.f32.mrb[0].mxu0
        %1858 = vmatprep.mubr.bf16.mxu0 %v1502
        %1859 = vmatmul.mubr.bf16.gmra.mrb[0].mxu0 %v1501
        %v1860 = vpop.f32.mrb[0].mxu0
        %v1861 = vadd.f32 0.0, %v1860
        %v1862 = vpop.f32.mrb[0].mxu0
        %v1863 = vpop.f32.mrb[0].mxu0
        %v1864 = vadd.f32 0.0, %v1863
        %v1865 = vpop.f32.mrb[0].mxu0
        %1866 = vmatprep.mubr.bf16.mxu0 %v1519
        %1867 = vmatmul.mubr.bf16.gmra.mrb[0].mxu0 %v1518
        %v1868 = vpop.f32.mrb[0].mxu0
        %v1869 = vadd.f32 0.0, %v1868
        %v1870 = vpop.f32.mrb[0].mxu0
        %v1871 = vpop.f32.mrb[0].mxu0
        %v1872 = vadd.f32 0.0, %v1871
        %v1873 = vpop.f32.mrb[0].mxu0
        %1874 = vmatprep.mubr.bf16.mxu0 %v1536
        %1875 = vmatmul.mubr.bf16.gmra.mrb[0].mxu0 %v1535
        %v1876 = vpop.f32.mrb[0].mxu0
        %v1877 = vadd.f32 0.0, %v1876
        %v1878 = vpop.f32.mrb[0].mxu0
        %v1879 = vpop.f32.mrb[0].mxu0
        %v1880 = vadd.f32 0.0, %v1879
        %v1881 = vpop.f32.mrb[0].mxu0
        %1882 = vdwg.mxu0
        %1883 = vmatprep.subr.bf16.mxu0 0
        %1884 = vmatpush1.bf16.msra.mxu0 %v482
        %1885 = vmatprep.subr.bf16.mxu0 0
        %1886 = vmatpush1.bf16.msra.mxu0 %v483
        %1887 = vmatprep.subr.bf16.mxu0 0
        %1888 = vmatpush1.bf16.msra.mxu0 %v484
        %1889 = vmatprep.subr.bf16.mxu0 0
        %1890 = vmatpush1.bf16.msra.mxu0 %v485
        %1891 = vmatprep.subr.bf16.mxu0 0
        %1892 = vmatpush1.bf16.msra.mxu0 %v486
        %1893 = vmatprep.subr.bf16.mxu0 0
        %1894 = vmatpush1.bf16.msra.mxu0 %v487
        %1895 = vmatprep.subr.bf16.mxu0 0
        %1896 = vmatpush1.bf16.msra.mxu0 %v488
        %1897 = vmatprep.subr.bf16.mxu0 0
        %1898 = vmatpush1.bf16.msra.mxu0 %v489
        %1899 = vmatprep.subr.bf16.mxu0 0
        %1900 = vmatpush1.bf16.msra.mxu0 %v490
        %1901 = vmatprep.subr.bf16.mxu0 0
        %1902 = vmatpush1.bf16.msra.mxu0 %v491
        %1903 = vmatprep.subr.bf16.mxu0 0
        %1904 = vmatpush1.bf16.msra.mxu0 %v492
        %1905 = vmatprep.subr.bf16.mxu0 0
        %1906 = vmatpush1.bf16.msra.mxu0 %v493
        %1907 = vmatprep.subr.bf16.mxu0 0
        %1908 = vmatpush1.bf16.msra.mxu0 %v494
        %1909 = vmatprep.subr.bf16.mxu0 0
        %1910 = vmatpush1.bf16.msra.mxu0 %v495
        %1911 = vmatprep.subr.bf16.mxu0 0
        %1912 = vmatpush1.bf16.msra.mxu0 %v496
        %1913 = vmatprep.subr.bf16.mxu0 0
        %1914 = vmatpush1.bf16.msra.mxu0 %v497
        %1915 = vmatprep.mubr.bf16.mxu0 %v1368
        %1916 = vmatmul.mubr.bf16.gmra.mrb[0].mxu0 %v1367
        %v1917 = vpop.f32.mrb[0].mxu0
        %v1918 = vadd.f32 %v1797, %v1917
        %v1919 = vpop.f32.mrb[0].mxu0
        %v1920 = vpop.f32.mrb[0].mxu0
        %v1921 = vadd.f32 %v1800, %v1920
        %v1922 = vpop.f32.mrb[0].mxu0
        %1923 = vmatprep.mubr.bf16.mxu0 %v1385
        %1924 = vmatmul.mubr.bf16.gmra.mrb[0].mxu0 %v1384
        %v1925 = vpop.f32.mrb[0].mxu0
        %v1926 = vadd.f32 %v1805, %v1925
        %v1927 = vpop.f32.mrb[0].mxu0
        %v1928 = vpop.f32.mrb[0].mxu0
        %v1929 = vadd.f32 %v1808, %v1928
        %v1930 = vpop.f32.mrb[0].mxu0
        %1931 = vmatprep.mubr.bf16.mxu0 %v1402
        %1932 = vmatmul.mubr.bf16.gmra.mrb[0].mxu0 %v1401
        %v1933 = vpop.f32.mrb[0].mxu0
        %v1934 = vadd.f32 %v1813, %v1933
        %v1935 = vpop.f32.mrb[0].mxu0
        %v1936 = vpop.f32.mrb[0].mxu0
        %v1937 = vadd.f32 %v1816, %v1936
        %v1938 = vpop.f32.mrb[0].mxu0
        %1939 = vmatprep.mubr.bf16.mxu0 %v1419
        %1940 = vmatmul.mubr.bf16.gmra.mrb[0].mxu0 %v1418
        %v1941 = vpop.f32.mrb[0].mxu0
        %v1942 = vadd.f32 %v1821, %v1941
        %v1943 = vpop.f32.mrb[0].mxu0
        %v1944 = vpop.f32.mrb[0].mxu0
        %v1945 = vadd.f32 %v1824, %v1944
        %v1946 = vpop.f32.mrb[0].mxu0
        %1947 = vmatprep.mubr.bf16.mxu0 %v1436
        %1948 = vmatmul.mubr.bf16.gmra.mrb[0].mxu0 %v1435
        %v1949 = vpop.f32.mrb[0].mxu0
        %v1950 = vadd.f32 %v1829, %v1949
        %v1951 = vpop.f32.mrb[0].mxu0
        %v1952 = vpop.f32.mrb[0].mxu0
        %v1953 = vadd.f32 %v1832, %v1952
        %v1954 = vpop.f32.mrb[0].mxu0
        %1955 = vmatprep.mubr.bf16.mxu0 %v1453
        %1956 = vmatmul.mubr.bf16.gmra.mrb[0].mxu0 %v1452
        %v1957 = vpop.f32.mrb[0].mxu0
        %v1958 = vadd.f32 %v1837, %v1957
        %v1959 = vpop.f32.mrb[0].mxu0
        %v1960 = vpop.f32.mrb[0].mxu0
        %v1961 = vadd.f32 %v1840, %v1960
        %v1962 = vpop.f32.mrb[0].mxu0
        %1963 = vmatprep.mubr.bf16.mxu0 %v1470
        %1964 = vmatmul.mubr.bf16.gmra.mrb[0].mxu0 %v1469
        %v1965 = vpop.f32.mrb[0].mxu0
        %v1966 = vadd.f32 %v1845, %v1965
        %v1967 = vpop.f32.mrb[0].mxu0
        %v1968 = vpop.f32.mrb[0].mxu0
        %v1969 = vadd.f32 %v1848, %v1968
        %v1970 = vpop.f32.mrb[0].mxu0
        %1971 = vmatprep.mubr.bf16.mxu0 %v1487
        %1972 = vmatmul.mubr.bf16.gmra.mrb[0].mxu0 %v1486
        %v1973 = vpop.f32.mrb[0].mxu0
        %v1974 = vadd.f32 %v1853, %v1973
        %v1975 = vpop.f32.mrb[0].mxu0
        %v1976 = vpop.f32.mrb[0].mxu0
        %v1977 = vadd.f32 %v1856, %v1976
        %v1978 = vpop.f32.mrb[0].mxu0
        %1979 = vmatprep.mubr.bf16.mxu0 %v1504
        %1980 = vmatmul.mubr.bf16.gmra.mrb[0].mxu0 %v1503
        %v1981 = vpop.f32.mrb[0].mxu0
        %v1982 = vadd.f32 %v1861, %v1981
        %v1983 = vpop.f32.mrb[0].mxu0
        %v1984 = vpop.f32.mrb[0].mxu0
        %v1985 = vadd.f32 %v1864, %v1984
        %v1986 = vpop.f32.mrb[0].mxu0
        %1987 = vmatprep.mubr.bf16.mxu0 %v1521
        %1988 = vmatmul.mubr.bf16.gmra.mrb[0].mxu0 %v1520
        %v1989 = vpop.f32.mrb[0].mxu0
        %v1990 = vadd.f32 %v1869, %v1989
        %v1991 = vpop.f32.mrb[0].mxu0
        %v1992 = vpop.f32.mrb[0].mxu0
        %v1993 = vadd.f32 %v1872, %v1992
        %v1994 = vpop.f32.mrb[0].mxu0
        %1995 = vmatprep.mubr.bf16.mxu0 %v1538
        %1996 = vmatmul.mubr.bf16.gmra.mrb[0].mxu0 %v1537
        %v1997 = vpop.f32.mrb[0].mxu0
        %v1998 = vadd.f32 %v1877, %v1997
        %v1999 = vpop.f32.mrb[0].mxu0
        %v2000 = vpop.f32.mrb[0].mxu0
        %v2001 = vadd.f32 %v1880, %v2000
        %v2002 = vpop.f32.mrb[0].mxu0
        %2003 = vdwg.mxu0
        %2004 = vmatprep.subr.bf16.mxu0 0
        %2005 = vmatpush1.bf16.msra.mxu0 %v498
        %2006 = vmatprep.subr.bf16.mxu0 0
        %2007 = vmatpush1.bf16.msra.mxu0 %v499
        %2008 = vmatprep.subr.bf16.mxu0 0
        %2009 = vmatpush1.bf16.msra.mxu0 %v500
        %2010 = vmatprep.subr.bf16.mxu0 0
        %2011 = vmatpush1.bf16.msra.mxu0 %v501
        %2012 = vmatprep.subr.bf16.mxu0 0
        %2013 = vmatpush1.bf16.msra.mxu0 %v502
        %2014 = vmatprep.subr.bf16.mxu0 0
        %2015 = vmatpush1.bf16.msra.mxu0 %v503
        %2016 = vmatprep.subr.bf16.mxu0 0
        %2017 = vmatpush1.bf16.msra.mxu0 %v504
        %2018 = vmatprep.subr.bf16.mxu0 0
        %2019 = vmatpush1.bf16.msra.mxu0 %v505
        %2020 = vmatprep.subr.bf16.mxu0 0
        %2021 = vmatpush1.bf16.msra.mxu0 %v506
        %2022 = vmatprep.subr.bf16.mxu0 0
        %2023 = vmatpush1.bf16.msra.mxu0 %v507
        %2024 = vmatprep.subr.bf16.mxu0 0
        %2025 = vmatpush1.bf16.msra.mxu0 %v508
        %2026 = vmatprep.subr.bf16.mxu0 0
        %2027 = vmatpush1.bf16.msra.mxu0 %v509
        %2028 = vmatprep.subr.bf16.mxu0 0
        %2029 = vmatpush1.bf16.msra.mxu0 %v510
        %2030 = vmatprep.subr.bf16.mxu0 0
        %2031 = vmatpush1.bf16.msra.mxu0 %v511
        %2032 = vmatprep.subr.bf16.mxu0 0
        %2033 = vmatpush1.bf16.msra.mxu0 %v512
        %2034 = vmatprep.subr.bf16.mxu0 0
        %2035 = vmatpush1.bf16.msra.mxu0 %v513
        %2036 = vmatprep.mubr.bf16.mxu0 %v1370
        %2037 = vmatmul.mubr.bf16.gmra.mrb[0].mxu0 %v1369
        %v2038 = vpop.f32.mrb[0].mxu0
        %v2039 = vadd.f32 %v1918, %v2038
        %v2040 = vpop.f32.mrb[0].mxu0
        %v2041 = vpop.f32.mrb[0].mxu0
        %v2042 = vadd.f32 %v1921, %v2041
        %v2043 = vpop.f32.mrb[0].mxu0
        %2044 = vmatprep.mubr.bf16.mxu0 %v1387
        %2045 = vmatmul.mubr.bf16.gmra.mrb[0].mxu0 %v1386
        %v2046 = vpop.f32.mrb[0].mxu0
        %v2047 = vadd.f32 %v1926, %v2046
        %v2048 = vpop.f32.mrb[0].mxu0
        %v2049 = vpop.f32.mrb[0].mxu0
        %v2050 = vadd.f32 %v1929, %v2049
        %v2051 = vpop.f32.mrb[0].mxu0
        %2052 = vmatprep.mubr.bf16.mxu0 %v1404
        %2053 = vmatmul.mubr.bf16.gmra.mrb[0].mxu0 %v1403
        %v2054 = vpop.f32.mrb[0].mxu0
        %v2055 = vadd.f32 %v1934, %v2054
        %v2056 = vpop.f32.mrb[0].mxu0
        %v2057 = vpop.f32.mrb[0].mxu0
        %v2058 = vadd.f32 %v1937, %v2057
        %v2059 = vpop.f32.mrb[0].mxu0
        %2060 = vmatprep.mubr.bf16.mxu0 %v1421
        %2061 = vmatmul.mubr.bf16.gmra.mrb[0].mxu0 %v1420
        %v2062 = vpop.f32.mrb[0].mxu0
        %v2063 = vadd.f32 %v1942, %v2062
        %v2064 = vpop.f32.mrb[0].mxu0
        %v2065 = vpop.f32.mrb[0].mxu0
        %v2066 = vadd.f32 %v1945, %v2065
        %v2067 = vpop.f32.mrb[0].mxu0
        %2068 = vmatprep.mubr.bf16.mxu0 %v1438
        %2069 = vmatmul.mubr.bf16.gmra.mrb[0].mxu0 %v1437
        %v2070 = vpop.f32.mrb[0].mxu0
        %v2071 = vadd.f32 %v1950, %v2070
        %v2072 = vpop.f32.mrb[0].mxu0
        %v2073 = vpop.f32.mrb[0].mxu0
        %v2074 = vadd.f32 %v1953, %v2073
        %v2075 = vpop.f32.mrb[0].mxu0
        %2076 = vmatprep.mubr.bf16.mxu0 %v1455
        %2077 = vmatmul.mubr.bf16.gmra.mrb[0].mxu0 %v1454
        %v2078 = vpop.f32.mrb[0].mxu0
        %v2079 = vadd.f32 %v1958, %v2078
        %v2080 = vpop.f32.mrb[0].mxu0
        %v2081 = vpop.f32.mrb[0].mxu0
        %v2082 = vadd.f32 %v1961, %v2081
        %v2083 = vpop.f32.mrb[0].mxu0
        %2084 = vmatprep.mubr.bf16.mxu0 %v1472
        %2085 = vmatmul.mubr.bf16.gmra.mrb[0].mxu0 %v1471
        %v2086 = vpop.f32.mrb[0].mxu0
        %v2087 = vadd.f32 %v1966, %v2086
        %v2088 = vpop.f32.mrb[0].mxu0
        %v2089 = vpop.f32.mrb[0].mxu0
        %v2090 = vadd.f32 %v1969, %v2089
        %v2091 = vpop.f32.mrb[0].mxu0
        %2092 = vmatprep.mubr.bf16.mxu0 %v1489
        %2093 = vmatmul.mubr.bf16.gmra.mrb[0].mxu0 %v1488
        %v2094 = vpop.f32.mrb[0].mxu0
        %v2095 = vadd.f32 %v1974, %v2094
        %v2096 = vpop.f32.mrb[0].mxu0
        %v2097 = vpop.f32.mrb[0].mxu0
        %v2098 = vadd.f32 %v1977, %v2097
        %v2099 = vpop.f32.mrb[0].mxu0
        %2100 = vmatprep.mubr.bf16.mxu0 %v1506
        %2101 = vmatmul.mubr.bf16.gmra.mrb[0].mxu0 %v1505
        %v2102 = vpop.f32.mrb[0].mxu0
        %v2103 = vadd.f32 %v1982, %v2102
        %v2104 = vpop.f32.mrb[0].mxu0
        %v2105 = vpop.f32.mrb[0].mxu0
        %v2106 = vadd.f32 %v1985, %v2105
        %v2107 = vpop.f32.mrb[0].mxu0
        %2108 = vmatprep.mubr.bf16.mxu0 %v1523
        %2109 = vmatmul.mubr.bf16.gmra.mrb[0].mxu0 %v1522
        %v2110 = vpop.f32.mrb[0].mxu0
        %v2111 = vadd.f32 %v1990, %v2110
        %v2112 = vpop.f32.mrb[0].mxu0
        %v2113 = vpop.f32.mrb[0].mxu0
        %v2114 = vadd.f32 %v1993, %v2113
        %v2115 = vpop.f32.mrb[0].mxu0
        %2116 = vmatprep.mubr.bf16.mxu0 %v1540
        %2117 = vmatmul.mubr.bf16.gmra.mrb[0].mxu0 %v1539
        %v2118 = vpop.f32.mrb[0].mxu0
        %v2119 = vadd.f32 %v1998, %v2118
        %v2120 = vpop.f32.mrb[0].mxu0
        %v2121 = vpop.f32.mrb[0].mxu0
        %v2122 = vadd.f32 %v2001, %v2121
        %v2123 = vpop.f32.mrb[0].mxu0
        %2124 = vdwg.mxu0
        %2125 = vmatprep.subr.bf16.mxu0 0
        %2126 = vmatpush1.bf16.msra.mxu0 %v514
        %2127 = vmatprep.subr.bf16.mxu0 0
        %2128 = vmatpush1.bf16.msra.mxu0 %v515
        %2129 = vmatprep.subr.bf16.mxu0 0
        %2130 = vmatpush1.bf16.msra.mxu0 %v516
        %2131 = vmatprep.subr.bf16.mxu0 0
        %2132 = vmatpush1.bf16.msra.mxu0 %v517
        %2133 = vmatprep.subr.bf16.mxu0 0
        %2134 = vmatpush1.bf16.msra.mxu0 %v518
        %2135 = vmatprep.subr.bf16.mxu0 0
        %2136 = vmatpush1.bf16.msra.mxu0 %v519
        %2137 = vmatprep.subr.bf16.mxu0 0
        %2138 = vmatpush1.bf16.msra.mxu0 %v520
        %2139 = vmatprep.subr.bf16.mxu0 0
        %2140 = vmatpush1.bf16.msra.mxu0 %v521
        %2141 = vmatprep.subr.bf16.mxu0 0
        %2142 = vmatpush1.bf16.msra.mxu0 %v522
        %2143 = vmatprep.subr.bf16.mxu0 0
        %2144 = vmatpush1.bf16.msra.mxu0 %v523
        %2145 = vmatprep.subr.bf16.mxu0 0
        %2146 = vmatpush1.bf16.msra.mxu0 %v524
        %2147 = vmatprep.subr.bf16.mxu0 0
        %2148 = vmatpush1.bf16.msra.mxu0 %v525
        %2149 = vmatprep.subr.bf16.mxu0 0
        %2150 = vmatpush1.bf16.msra.mxu0 %v526
        %2151 = vmatprep.subr.bf16.mxu0 0
        %2152 = vmatpush1.bf16.msra.mxu0 %v527
        %2153 = vmatprep.subr.bf16.mxu0 0
        %2154 = vmatpush1.bf16.msra.mxu0 %v528
        %2155 = vmatprep.subr.bf16.mxu0 0
        %2156 = vmatpush1.bf16.msra.mxu0 %v529
        %2157 = vmatprep.mubr.bf16.mxu0 %v1372
        %2158 = vmatmul.mubr.bf16.gmra.mrb[0].mxu0 %v1371
        %v2159 = vpop.f32.mrb[0].mxu0
        %v2160 = vadd.f32 %v2039, %v2159
        %v2161 = vpop.f32.mrb[0].mxu0
        %v2162 = vpop.f32.mrb[0].mxu0
        %v2163 = vadd.f32 %v2042, %v2162
        %v2164 = vpop.f32.mrb[0].mxu0
        %2165 = vmatprep.mubr.bf16.mxu0 %v1389
        %2166 = vmatmul.mubr.bf16.gmra.mrb[0].mxu0 %v1388
        %v2167 = vpop.f32.mrb[0].mxu0
        %v2168 = vadd.f32 %v2047, %v2167
        %v2169 = vpop.f32.mrb[0].mxu0
        %v2170 = vpop.f32.mrb[0].mxu0
        %v2171 = vadd.f32 %v2050, %v2170
        %v2172 = vpop.f32.mrb[0].mxu0
        %2173 = vmatprep.mubr.bf16.mxu0 %v1406
        %2174 = vmatmul.mubr.bf16.gmra.mrb[0].mxu0 %v1405
        %v2175 = vpop.f32.mrb[0].mxu0
        %v2176 = vadd.f32 %v2055, %v2175
        %v2177 = vpop.f32.mrb[0].mxu0
        %v2178 = vpop.f32.mrb[0].mxu0
        %v2179 = vadd.f32 %v2058, %v2178
        %v2180 = vpop.f32.mrb[0].mxu0
        %2181 = vmatprep.mubr.bf16.mxu0 %v1423
        %2182 = vmatmul.mubr.bf16.gmra.mrb[0].mxu0 %v1422
        %v2183 = vpop.f32.mrb[0].mxu0
        %v2184 = vadd.f32 %v2063, %v2183
        %v2185 = vpop.f32.mrb[0].mxu0
        %v2186 = vpop.f32.mrb[0].mxu0
        %v2187 = vadd.f32 %v2066, %v2186
        %v2188 = vpop.f32.mrb[0].mxu0
        %2189 = vmatprep.mubr.bf16.mxu0 %v1440
        %2190 = vmatmul.mubr.bf16.gmra.mrb[0].mxu0 %v1439
        %v2191 = vpop.f32.mrb[0].mxu0
        %v2192 = vadd.f32 %v2071, %v2191
        %v2193 = vpop.f32.mrb[0].mxu0
        %v2194 = vpop.f32.mrb[0].mxu0
        %v2195 = vadd.f32 %v2074, %v2194
        %v2196 = vpop.f32.mrb[0].mxu0
        %2197 = vmatprep.mubr.bf16.mxu0 %v1457
        %2198 = vmatmul.mubr.bf16.gmra.mrb[0].mxu0 %v1456
        %v2199 = vpop.f32.mrb[0].mxu0
        %v2200 = vadd.f32 %v2079, %v2199
        %v2201 = vpop.f32.mrb[0].mxu0
        %v2202 = vpop.f32.mrb[0].mxu0
        %v2203 = vadd.f32 %v2082, %v2202
        %v2204 = vpop.f32.mrb[0].mxu0
        %2205 = vmatprep.mubr.bf16.mxu0 %v1474
        %2206 = vmatmul.mubr.bf16.gmra.mrb[0].mxu0 %v1473
        %v2207 = vpop.f32.mrb[0].mxu0
        %v2208 = vadd.f32 %v2087, %v2207
        %v2209 = vpop.f32.mrb[0].mxu0
        %v2210 = vpop.f32.mrb[0].mxu0
        %v2211 = vadd.f32 %v2090, %v2210
        %v2212 = vpop.f32.mrb[0].mxu0
        %2213 = vmatprep.mubr.bf16.mxu0 %v1491
        %2214 = vmatmul.mubr.bf16.gmra.mrb[0].mxu0 %v1490
        %v2215 = vpop.f32.mrb[0].mxu0
        %v2216 = vadd.f32 %v2095, %v2215
        %v2217 = vpop.f32.mrb[0].mxu0
        %v2218 = vpop.f32.mrb[0].mxu0
        %v2219 = vadd.f32 %v2098, %v2218
        %v2220 = vpop.f32.mrb[0].mxu0
        %2221 = vmatprep.mubr.bf16.mxu0 %v1508
        %2222 = vmatmul.mubr.bf16.gmra.mrb[0].mxu0 %v1507
        %v2223 = vpop.f32.mrb[0].mxu0
        %v2224 = vadd.f32 %v2103, %v2223
        %v2225 = vpop.f32.mrb[0].mxu0
        %v2226 = vpop.f32.mrb[0].mxu0
        %v2227 = vadd.f32 %v2106, %v2226
        %v2228 = vpop.f32.mrb[0].mxu0
        %2229 = vmatprep.mubr.bf16.mxu0 %v1525
        %2230 = vmatmul.mubr.bf16.gmra.mrb[0].mxu0 %v1524
        %v2231 = vpop.f32.mrb[0].mxu0
        %v2232 = vadd.f32 %v2111, %v2231
        %v2233 = vpop.f32.mrb[0].mxu0
        %v2234 = vpop.f32.mrb[0].mxu0
        %v2235 = vadd.f32 %v2114, %v2234
        %v2236 = vpop.f32.mrb[0].mxu0
        %2237 = vmatprep.mubr.bf16.mxu0 %v1542
        %2238 = vmatmul.mubr.bf16.gmra.mrb[0].mxu0 %v1541
        %v2239 = vpop.f32.mrb[0].mxu0
        %v2240 = vadd.f32 %v2119, %v2239
        %v2241 = vpop.f32.mrb[0].mxu0
        %v2242 = vpop.f32.mrb[0].mxu0
        %v2243 = vadd.f32 %v2122, %v2242
        %v2244 = vpop.f32.mrb[0].mxu0
        %2245 = vdwg.mxu0
        %2246 = vmatprep.subr.bf16.mxu0 0
        %2247 = vmatpush1.bf16.msra.mxu0 %v530
        %2248 = vmatprep.subr.bf16.mxu0 0
        %2249 = vmatpush1.bf16.msra.mxu0 %v531
        %2250 = vmatprep.subr.bf16.mxu0 0
        %2251 = vmatpush1.bf16.msra.mxu0 %v532
        %2252 = vmatprep.subr.bf16.mxu0 0
        %2253 = vmatpush1.bf16.msra.mxu0 %v533
        %2254 = vmatprep.subr.bf16.mxu0 0
        %2255 = vmatpush1.bf16.msra.mxu0 %v534
        %2256 = vmatprep.subr.bf16.mxu0 0
        %2257 = vmatpush1.bf16.msra.mxu0 %v535
        %2258 = vmatprep.subr.bf16.mxu0 0
        %2259 = vmatpush1.bf16.msra.mxu0 %v536
        %2260 = vmatprep.subr.bf16.mxu0 0
        %2261 = vmatpush1.bf16.msra.mxu0 %v537
        %2262 = vmatprep.subr.bf16.mxu0 0
        %2263 = vmatpush1.bf16.msra.mxu0 %v538
        %2264 = vmatprep.subr.bf16.mxu0 0
        %2265 = vmatpush1.bf16.msra.mxu0 %v539
        %2266 = vmatprep.subr.bf16.mxu0 0
        %2267 = vmatpush1.bf16.msra.mxu0 %v540
        %2268 = vmatprep.subr.bf16.mxu0 0
        %2269 = vmatpush1.bf16.msra.mxu0 %v541
        %2270 = vmatprep.subr.bf16.mxu0 0
        %2271 = vmatpush1.bf16.msra.mxu0 %v542
        %2272 = vmatprep.subr.bf16.mxu0 0
        %2273 = vmatpush1.bf16.msra.mxu0 %v543
        %2274 = vmatprep.subr.bf16.mxu0 0
        %2275 = vmatpush1.bf16.msra.mxu0 %v544
        %2276 = vmatprep.subr.bf16.mxu0 0
        %2277 = vmatpush1.bf16.msra.mxu0 %v545
        %2278 = vmatprep.mubr.bf16.mxu0 %v1374
        %2279 = vmatmul.mubr.bf16.gmra.mrb[0].mxu0 %v1373
        %v2280 = vpop.f32.mrb[0].mxu0
        %v2281 = vadd.f32 %v2160, %v2280
        %v2282 = vpop.f32.mrb[0].mxu0
        %v2283 = vpop.f32.mrb[0].mxu0
        %v2284 = vadd.f32 %v2163, %v2283
        %v2285 = vpop.f32.mrb[0].mxu0
        %2286 = vmatprep.mubr.bf16.mxu0 %v1391
        %2287 = vmatmul.mubr.bf16.gmra.mrb[0].mxu0 %v1390
        %v2288 = vpop.f32.mrb[0].mxu0
        %v2289 = vadd.f32 %v2168, %v2288
        %v2290 = vpop.f32.mrb[0].mxu0
        %v2291 = vpop.f32.mrb[0].mxu0
        %v2292 = vadd.f32 %v2171, %v2291
        %v2293 = vpop.f32.mrb[0].mxu0
        %2294 = vmatprep.mubr.bf16.mxu0 %v1408
        %2295 = vmatmul.mubr.bf16.gmra.mrb[0].mxu0 %v1407
        %v2296 = vpop.f32.mrb[0].mxu0
        %v2297 = vadd.f32 %v2176, %v2296
        %v2298 = vpop.f32.mrb[0].mxu0
        %v2299 = vpop.f32.mrb[0].mxu0
        %v2300 = vadd.f32 %v2179, %v2299
        %v2301 = vpop.f32.mrb[0].mxu0
        %2302 = vmatprep.mubr.bf16.mxu0 %v1425
        %2303 = vmatmul.mubr.bf16.gmra.mrb[0].mxu0 %v1424
        %v2304 = vpop.f32.mrb[0].mxu0
        %v2305 = vadd.f32 %v2184, %v2304
        %v2306 = vpop.f32.mrb[0].mxu0
        %v2307 = vpop.f32.mrb[0].mxu0
        %v2308 = vadd.f32 %v2187, %v2307
        %v2309 = vpop.f32.mrb[0].mxu0
        %2310 = vmatprep.mubr.bf16.mxu0 %v1442
        %2311 = vmatmul.mubr.bf16.gmra.mrb[0].mxu0 %v1441
        %v2312 = vpop.f32.mrb[0].mxu0
        %v2313 = vadd.f32 %v2192, %v2312
        %v2314 = vpop.f32.mrb[0].mxu0
        %v2315 = vpop.f32.mrb[0].mxu0
        %v2316 = vadd.f32 %v2195, %v2315
        %v2317 = vpop.f32.mrb[0].mxu0
        %2318 = vmatprep.mubr.bf16.mxu0 %v1459
        %2319 = vmatmul.mubr.bf16.gmra.mrb[0].mxu0 %v1458
        %v2320 = vpop.f32.mrb[0].mxu0
        %v2321 = vadd.f32 %v2200, %v2320
        %v2322 = vpop.f32.mrb[0].mxu0
        %v2323 = vpop.f32.mrb[0].mxu0
        %v2324 = vadd.f32 %v2203, %v2323
        %v2325 = vpop.f32.mrb[0].mxu0
        %2326 = vmatprep.mubr.bf16.mxu0 %v1476
        %2327 = vmatmul.mubr.bf16.gmra.mrb[0].mxu0 %v1475
        %v2328 = vpop.f32.mrb[0].mxu0
        %v2329 = vadd.f32 %v2208, %v2328
        %v2330 = vpop.f32.mrb[0].mxu0
        %v2331 = vpop.f32.mrb[0].mxu0
        %v2332 = vadd.f32 %v2211, %v2331
        %v2333 = vpop.f32.mrb[0].mxu0
        %2334 = vmatprep.mubr.bf16.mxu0 %v1493
        %2335 = vmatmul.mubr.bf16.gmra.mrb[0].mxu0 %v1492
        %v2336 = vpop.f32.mrb[0].mxu0
        %v2337 = vadd.f32 %v2216, %v2336
        %v2338 = vpop.f32.mrb[0].mxu0
        %v2339 = vpop.f32.mrb[0].mxu0
        %v2340 = vadd.f32 %v2219, %v2339
        %v2341 = vpop.f32.mrb[0].mxu0
        %2342 = vmatprep.mubr.bf16.mxu0 %v1510
        %2343 = vmatmul.mubr.bf16.gmra.mrb[0].mxu0 %v1509
        %v2344 = vpop.f32.mrb[0].mxu0
        %v2345 = vadd.f32 %v2224, %v2344
        %v2346 = vpop.f32.mrb[0].mxu0
        %v2347 = vpop.f32.mrb[0].mxu0
        %v2348 = vadd.f32 %v2227, %v2347
        %v2349 = vpop.f32.mrb[0].mxu0
        %2350 = vmatprep.mubr.bf16.mxu0 %v1527
        %2351 = vmatmul.mubr.bf16.gmra.mrb[0].mxu0 %v1526
        %v2352 = vpop.f32.mrb[0].mxu0
        %v2353 = vadd.f32 %v2232, %v2352
        %v2354 = vpop.f32.mrb[0].mxu0
        %v2355 = vpop.f32.mrb[0].mxu0
        %v2356 = vadd.f32 %v2235, %v2355
        %v2357 = vpop.f32.mrb[0].mxu0
        %2358 = vmatprep.mubr.bf16.mxu0 %v1544
        %2359 = vmatmul.mubr.bf16.gmra.mrb[0].mxu0 %v1543
        %v2360 = vpop.f32.mrb[0].mxu0
        %v2361 = vadd.f32 %v2240, %v2360
        %v2362 = vpop.f32.mrb[0].mxu0
        %v2363 = vpop.f32.mrb[0].mxu0
        %v2364 = vadd.f32 %v2243, %v2363
        %v2365 = vpop.f32.mrb[0].mxu0
        %2366 = vdwg.mxu0
        %2367 = vmatprep.subr.bf16.mxu0 0
        %2368 = vmatpush1.bf16.msra.mxu0 %v546
        %2369 = vmatprep.subr.bf16.mxu0 0
        %2370 = vmatpush1.bf16.msra.mxu0 %v547
        %2371 = vmatprep.subr.bf16.mxu0 0
        %2372 = vmatpush1.bf16.msra.mxu0 %v548
        %2373 = vmatprep.subr.bf16.mxu0 0
        %2374 = vmatpush1.bf16.msra.mxu0 %v549
        %2375 = vmatprep.subr.bf16.mxu0 0
        %2376 = vmatpush1.bf16.msra.mxu0 %v550
        %2377 = vmatprep.subr.bf16.mxu0 0
        %2378 = vmatpush1.bf16.msra.mxu0 %v551
        %2379 = vmatprep.subr.bf16.mxu0 0
        %2380 = vmatpush1.bf16.msra.mxu0 %v552
        %2381 = vmatprep.subr.bf16.mxu0 0
        %2382 = vmatpush1.bf16.msra.mxu0 %v553
        %2383 = vmatprep.subr.bf16.mxu0 0
        %2384 = vmatpush1.bf16.msra.mxu0 %v554
        %2385 = vmatprep.subr.bf16.mxu0 0
        %2386 = vmatpush1.bf16.msra.mxu0 %v555
        %2387 = vmatprep.subr.bf16.mxu0 0
        %2388 = vmatpush1.bf16.msra.mxu0 %v556
        %2389 = vmatprep.subr.bf16.mxu0 0
        %2390 = vmatpush1.bf16.msra.mxu0 %v557
        %2391 = vmatprep.subr.bf16.mxu0 0
        %2392 = vmatpush1.bf16.msra.mxu0 %v558
        %2393 = vmatprep.subr.bf16.mxu0 0
        %2394 = vmatpush1.bf16.msra.mxu0 %v559
        %2395 = vmatprep.subr.bf16.mxu0 0
        %2396 = vmatpush1.bf16.msra.mxu0 %v560
        %2397 = vmatprep.subr.bf16.mxu0 0
        %2398 = vmatpush1.bf16.msra.mxu0 %v561
        %2399 = vmatprep.mubr.bf16.mxu0 %v1376
        %2400 = vmatmul.mubr.bf16.gmra.mrb[0].mxu0 %v1375
        %v2401 = vpop.f32.mrb[0].mxu0
        %v2402 = vadd.f32 %v2281, %v2401
        %v2403 = vpop.f32.mrb[0].mxu0
        %v2404 = vpop.f32.mrb[0].mxu0
        %v2405 = vadd.f32 %v2284, %v2404
        %v2406 = vpop.f32.mrb[0].mxu0
        %2407 = vmatprep.mubr.bf16.mxu0 %v1393
        %2408 = vmatmul.mubr.bf16.gmra.mrb[0].mxu0 %v1392
        %v2409 = vpop.f32.mrb[0].mxu0
        %v2410 = vadd.f32 %v2289, %v2409
        %v2411 = vpop.f32.mrb[0].mxu0
        %v2412 = vpop.f32.mrb[0].mxu0
        %v2413 = vadd.f32 %v2292, %v2412
        %v2414 = vpop.f32.mrb[0].mxu0
        %2415 = vmatprep.mubr.bf16.mxu0 %v1410
        %2416 = vmatmul.mubr.bf16.gmra.mrb[0].mxu0 %v1409
        %v2417 = vpop.f32.mrb[0].mxu0
        %v2418 = vadd.f32 %v2297, %v2417
        %v2419 = vpop.f32.mrb[0].mxu0
        %v2420 = vpop.f32.mrb[0].mxu0
        %v2421 = vadd.f32 %v2300, %v2420
        %v2422 = vpop.f32.mrb[0].mxu0
        %2423 = vmatprep.mubr.bf16.mxu0 %v1427
        %2424 = vmatmul.mubr.bf16.gmra.mrb[0].mxu0 %v1426
        %v2425 = vpop.f32.mrb[0].mxu0
        %v2426 = vadd.f32 %v2305, %v2425
        %v2427 = vpop.f32.mrb[0].mxu0
        %v2428 = vpop.f32.mrb[0].mxu0
        %v2429 = vadd.f32 %v2308, %v2428
        %v2430 = vpop.f32.mrb[0].mxu0
        %2431 = vmatprep.mubr.bf16.mxu0 %v1444
        %2432 = vmatmul.mubr.bf16.gmra.mrb[0].mxu0 %v1443
        %v2433 = vpop.f32.mrb[0].mxu0
        %v2434 = vadd.f32 %v2313, %v2433
        %v2435 = vpop.f32.mrb[0].mxu0
        %v2436 = vpop.f32.mrb[0].mxu0
        %v2437 = vadd.f32 %v2316, %v2436
        %v2438 = vpop.f32.mrb[0].mxu0
        %2439 = vmatprep.mubr.bf16.mxu0 %v1461
        %2440 = vmatmul.mubr.bf16.gmra.mrb[0].mxu0 %v1460
        %v2441 = vpop.f32.mrb[0].mxu0
        %v2442 = vadd.f32 %v2321, %v2441
        %v2443 = vpop.f32.mrb[0].mxu0
        %v2444 = vpop.f32.mrb[0].mxu0
        %v2445 = vadd.f32 %v2324, %v2444
        %v2446 = vpop.f32.mrb[0].mxu0
        %2447 = vmatprep.mubr.bf16.mxu0 %v1478
        %2448 = vmatmul.mubr.bf16.gmra.mrb[0].mxu0 %v1477
        %v2449 = vpop.f32.mrb[0].mxu0
        %v2450 = vadd.f32 %v2329, %v2449
        %v2451 = vpop.f32.mrb[0].mxu0
        %v2452 = vpop.f32.mrb[0].mxu0
        %v2453 = vadd.f32 %v2332, %v2452
        %v2454 = vpop.f32.mrb[0].mxu0
        %2455 = vmatprep.mubr.bf16.mxu0 %v1495
        %2456 = vmatmul.mubr.bf16.gmra.mrb[0].mxu0 %v1494
        %v2457 = vpop.f32.mrb[0].mxu0
        %v2458 = vadd.f32 %v2337, %v2457
        %v2459 = vpop.f32.mrb[0].mxu0
        %v2460 = vpop.f32.mrb[0].mxu0
        %v2461 = vadd.f32 %v2340, %v2460
        %v2462 = vpop.f32.mrb[0].mxu0
        %2463 = vmatprep.mubr.bf16.mxu0 %v1512
        %2464 = vmatmul.mubr.bf16.gmra.mrb[0].mxu0 %v1511
        %v2465 = vpop.f32.mrb[0].mxu0
        %v2466 = vadd.f32 %v2345, %v2465
        %v2467 = vpop.f32.mrb[0].mxu0
        %v2468 = vpop.f32.mrb[0].mxu0
        %v2469 = vadd.f32 %v2348, %v2468
        %v2470 = vpop.f32.mrb[0].mxu0
        %2471 = vmatprep.mubr.bf16.mxu0 %v1529
        %2472 = vmatmul.mubr.bf16.gmra.mrb[0].mxu0 %v1528
        %v2473 = vpop.f32.mrb[0].mxu0
        %v2474 = vadd.f32 %v2353, %v2473
        %v2475 = vpop.f32.mrb[0].mxu0
        %v2476 = vpop.f32.mrb[0].mxu0
        %v2477 = vadd.f32 %v2356, %v2476
        %v2478 = vpop.f32.mrb[0].mxu0
        %2479 = vmatprep.mubr.bf16.mxu0 %v1546
        %2480 = vmatmul.mubr.bf16.gmra.mrb[0].mxu0 %v1545
        %v2481 = vpop.f32.mrb[0].mxu0
        %v2482 = vadd.f32 %v2361, %v2481
        %v2483 = vpop.f32.mrb[0].mxu0
        %v2484 = vpop.f32.mrb[0].mxu0
        %v2485 = vadd.f32 %v2364, %v2484
        %v2486 = vpop.f32.mrb[0].mxu0
        %2487 = vdwg.mxu0
        %2488 = vmatprep.subr.bf16.mxu0 0
        %2489 = vmatpush1.bf16.msra.mxu0 %v562
        %2490 = vmatprep.subr.bf16.mxu0 0
        %2491 = vmatpush1.bf16.msra.mxu0 %v563
        %2492 = vmatprep.subr.bf16.mxu0 0
        %2493 = vmatpush1.bf16.msra.mxu0 %v564
        %2494 = vmatprep.subr.bf16.mxu0 0
        %2495 = vmatpush1.bf16.msra.mxu0 %v565
        %2496 = vmatprep.subr.bf16.mxu0 0
        %2497 = vmatpush1.bf16.msra.mxu0 %v566
        %2498 = vmatprep.subr.bf16.mxu0 0
        %2499 = vmatpush1.bf16.msra.mxu0 %v567
        %2500 = vmatprep.subr.bf16.mxu0 0
        %2501 = vmatpush1.bf16.msra.mxu0 %v568
        %2502 = vmatprep.subr.bf16.mxu0 0
        %2503 = vmatpush1.bf16.msra.mxu0 %v569
        %2504 = vmatprep.subr.bf16.mxu0 0
        %2505 = vmatpush1.bf16.msra.mxu0 %v570
        %2506 = vmatprep.subr.bf16.mxu0 0
        %2507 = vmatpush1.bf16.msra.mxu0 %v571
        %2508 = vmatprep.subr.bf16.mxu0 0
        %2509 = vmatpush1.bf16.msra.mxu0 %v572
        %2510 = vmatprep.subr.bf16.mxu0 0
        %2511 = vmatpush1.bf16.msra.mxu0 %v573
        %2512 = vmatprep.subr.bf16.mxu0 0
        %2513 = vmatpush1.bf16.msra.mxu0 %v574
        %2514 = vmatprep.subr.bf16.mxu0 0
        %2515 = vmatpush1.bf16.msra.mxu0 %v575
        %2516 = vmatprep.subr.bf16.mxu0 0
        %2517 = vmatpush1.bf16.msra.mxu0 %v576
        %2518 = vmatprep.subr.bf16.mxu0 0
        %2519 = vmatpush1.bf16.msra.mxu0 %v577
        %2520 = vmatprep.mubr.bf16.mxu0 %v1378
        %2521 = vmatmul.mubr.bf16.gmra.mrb[0].mxu0 %v1377
        %v2522 = vpop.f32.mrb[0].mxu0
        %v2523 = vadd.f32 %v2402, %v2522
        %v2524 = vpop.f32.mrb[0].mxu0
        %v2525 = vpop.f32.mrb[0].mxu0
        %v2526 = vadd.f32 %v2405, %v2525
        %v2527 = vpop.f32.mrb[0].mxu0
        %2528 = vmatprep.mubr.bf16.mxu0 %v1395
        %2529 = vmatmul.mubr.bf16.gmra.mrb[0].mxu0 %v1394
        %v2530 = vpop.f32.mrb[0].mxu0
        %v2531 = vadd.f32 %v2410, %v2530
        %v2532 = vpop.f32.mrb[0].mxu0
        %v2533 = vpop.f32.mrb[0].mxu0
        %v2534 = vadd.f32 %v2413, %v2533
        %v2535 = vpop.f32.mrb[0].mxu0
        %2536 = vmatprep.mubr.bf16.mxu0 %v1412
        %2537 = vmatmul.mubr.bf16.gmra.mrb[0].mxu0 %v1411
        %v2538 = vpop.f32.mrb[0].mxu0
        %v2539 = vadd.f32 %v2418, %v2538
        %v2540 = vpop.f32.mrb[0].mxu0
        %v2541 = vpop.f32.mrb[0].mxu0
        %v2542 = vadd.f32 %v2421, %v2541
        %v2543 = vpop.f32.mrb[0].mxu0
        %2544 = vmatprep.mubr.bf16.mxu0 %v1429
        %2545 = vmatmul.mubr.bf16.gmra.mrb[0].mxu0 %v1428
        %v2546 = vpop.f32.mrb[0].mxu0
        %v2547 = vadd.f32 %v2426, %v2546
        %v2548 = vpop.f32.mrb[0].mxu0
        %v2549 = vpop.f32.mrb[0].mxu0
        %v2550 = vadd.f32 %v2429, %v2549
        %v2551 = vpop.f32.mrb[0].mxu0
        %2552 = vmatprep.mubr.bf16.mxu0 %v1446
        %2553 = vmatmul.mubr.bf16.gmra.mrb[0].mxu0 %v1445
        %v2554 = vpop.f32.mrb[0].mxu0
        %v2555 = vadd.f32 %v2434, %v2554
        %v2556 = vpop.f32.mrb[0].mxu0
        %v2557 = vpop.f32.mrb[0].mxu0
        %v2558 = vadd.f32 %v2437, %v2557
        %v2559 = vpop.f32.mrb[0].mxu0
        %2560 = vmatprep.mubr.bf16.mxu0 %v1463
        %2561 = vmatmul.mubr.bf16.gmra.mrb[0].mxu0 %v1462
        %v2562 = vpop.f32.mrb[0].mxu0
        %v2563 = vadd.f32 %v2442, %v2562
        %v2564 = vpop.f32.mrb[0].mxu0
        %v2565 = vpop.f32.mrb[0].mxu0
        %v2566 = vadd.f32 %v2445, %v2565
        %v2567 = vpop.f32.mrb[0].mxu0
        %2568 = vmatprep.mubr.bf16.mxu0 %v1480
        %2569 = vmatmul.mubr.bf16.gmra.mrb[0].mxu0 %v1479
        %v2570 = vpop.f32.mrb[0].mxu0
        %v2571 = vadd.f32 %v2450, %v2570
        %v2572 = vpop.f32.mrb[0].mxu0
        %v2573 = vpop.f32.mrb[0].mxu0
        %v2574 = vadd.f32 %v2453, %v2573
        %v2575 = vpop.f32.mrb[0].mxu0
        %2576 = vmatprep.mubr.bf16.mxu0 %v1497
        %2577 = vmatmul.mubr.bf16.gmra.mrb[0].mxu0 %v1496
        %v2578 = vpop.f32.mrb[0].mxu0
        %v2579 = vadd.f32 %v2458, %v2578
        %v2580 = vpop.f32.mrb[0].mxu0
        %v2581 = vpop.f32.mrb[0].mxu0
        %v2582 = vadd.f32 %v2461, %v2581
        %v2583 = vpop.f32.mrb[0].mxu0
        %2584 = vmatprep.mubr.bf16.mxu0 %v1514
        %2585 = vmatmul.mubr.bf16.gmra.mrb[0].mxu0 %v1513
        %v2586 = vpop.f32.mrb[0].mxu0
        %v2587 = vadd.f32 %v2466, %v2586
        %v2588 = vpop.f32.mrb[0].mxu0
        %v2589 = vpop.f32.mrb[0].mxu0
        %v2590 = vadd.f32 %v2469, %v2589
        %v2591 = vpop.f32.mrb[0].mxu0
        %2592 = vmatprep.mubr.bf16.mxu0 %v1531
        %2593 = vmatmul.mubr.bf16.gmra.mrb[0].mxu0 %v1530
        %v2594 = vpop.f32.mrb[0].mxu0
        %v2595 = vadd.f32 %v2474, %v2594
        %v2596 = vpop.f32.mrb[0].mxu0
        %v2597 = vpop.f32.mrb[0].mxu0
        %v2598 = vadd.f32 %v2477, %v2597
        %v2599 = vpop.f32.mrb[0].mxu0
        %2600 = vmatprep.mubr.bf16.mxu0 %v1548
        %2601 = vmatmul.mubr.bf16.gmra.mrb[0].mxu0 %v1547
        %v2602 = vpop.f32.mrb[0].mxu0
        %v2603 = vadd.f32 %v2482, %v2602
        %v2604 = vpop.f32.mrb[0].mxu0
        %v2605 = vpop.f32.mrb[0].mxu0
        %v2606 = vadd.f32 %v2485, %v2605
        %v2607 = vpop.f32.mrb[0].mxu0
        %2608 = vdwg.mxu0
        %2609 = vmatprep.subr.bf16.mxu0 0
        %2610 = vmatpush1.bf16.msra.mxu0 %v578
        %2611 = vmatprep.subr.bf16.mxu0 0
        %2612 = vmatpush1.bf16.msra.mxu0 %v579
        %2613 = vmatprep.subr.bf16.mxu0 0
        %2614 = vmatpush1.bf16.msra.mxu0 %v580
        %2615 = vmatprep.subr.bf16.mxu0 0
        %2616 = vmatpush1.bf16.msra.mxu0 %v581
        %2617 = vmatprep.subr.bf16.mxu0 0
        %2618 = vmatpush1.bf16.msra.mxu0 %v582
        %2619 = vmatprep.subr.bf16.mxu0 0
        %2620 = vmatpush1.bf16.msra.mxu0 %v583
        %2621 = vmatprep.subr.bf16.mxu0 0
        %2622 = vmatpush1.bf16.msra.mxu0 %v584
        %2623 = vmatprep.subr.bf16.mxu0 0
        %2624 = vmatpush1.bf16.msra.mxu0 %v585
        %2625 = vmatprep.subr.bf16.mxu0 0
        %2626 = vmatpush1.bf16.msra.mxu0 %v586
        %2627 = vmatprep.subr.bf16.mxu0 0
        %2628 = vmatpush1.bf16.msra.mxu0 %v587
        %2629 = vmatprep.subr.bf16.mxu0 0
        %2630 = vmatpush1.bf16.msra.mxu0 %v588
        %2631 = vmatprep.subr.bf16.mxu0 0
        %2632 = vmatpush1.bf16.msra.mxu0 %v589
        %2633 = vmatprep.subr.bf16.mxu0 0
        %2634 = vmatpush1.bf16.msra.mxu0 %v590
        %2635 = vmatprep.subr.bf16.mxu0 0
        %2636 = vmatpush1.bf16.msra.mxu0 %v591
        %2637 = vmatprep.subr.bf16.mxu0 0
        %2638 = vmatpush1.bf16.msra.mxu0 %v592
        %2639 = vmatprep.subr.bf16.mxu0 0
        %2640 = vmatpush1.bf16.msra.mxu0 %v593
        %2641 = vmatprep.mubr.bf16.mxu0 %v1380
        %2642 = vmatmul.mubr.bf16.gmra.mrb[0].mxu0 %v1379
        %v2643 = vpop.f32.mrb[0].mxu0
        %v2644 = vadd.f32 %v2523, %v2643
        %v2645 = vpop.f32.mrb[0].mxu0
        %v2646 = vpop.f32.mrb[0].mxu0
        %v2647 = vadd.f32 %v2526, %v2646
        %v2648 = vpop.f32.mrb[0].mxu0
        %2649 = vmatprep.mubr.bf16.mxu0 %v1397
        %2650 = vmatmul.mubr.bf16.gmra.mrb[0].mxu0 %v1396
        %v2651 = vpop.f32.mrb[0].mxu0
        %v2652 = vadd.f32 %v2531, %v2651
        %v2653 = vpop.f32.mrb[0].mxu0
        %v2654 = vpop.f32.mrb[0].mxu0
        %v2655 = vadd.f32 %v2534, %v2654
        %v2656 = vpop.f32.mrb[0].mxu0
        %2657 = vmatprep.mubr.bf16.mxu0 %v1414
        %2658 = vmatmul.mubr.bf16.gmra.mrb[0].mxu0 %v1413
        %v2659 = vpop.f32.mrb[0].mxu0
        %v2660 = vadd.f32 %v2539, %v2659
        %v2661 = vpop.f32.mrb[0].mxu0
        %v2662 = vpop.f32.mrb[0].mxu0
        %v2663 = vadd.f32 %v2542, %v2662
        %v2664 = vpop.f32.mrb[0].mxu0
        %2665 = vmatprep.mubr.bf16.mxu0 %v1431
        %2666 = vmatmul.mubr.bf16.gmra.mrb[0].mxu0 %v1430
        %v2667 = vpop.f32.mrb[0].mxu0
        %v2668 = vadd.f32 %v2547, %v2667
        %v2669 = vpop.f32.mrb[0].mxu0
        %v2670 = vpop.f32.mrb[0].mxu0
        %v2671 = vadd.f32 %v2550, %v2670
        %v2672 = vpop.f32.mrb[0].mxu0
        %2673 = vmatprep.mubr.bf16.mxu0 %v1448
        %2674 = vmatmul.mubr.bf16.gmra.mrb[0].mxu0 %v1447
        %v2675 = vpop.f32.mrb[0].mxu0
        %v2676 = vadd.f32 %v2555, %v2675
        %v2677 = vpop.f32.mrb[0].mxu0
        %v2678 = vpop.f32.mrb[0].mxu0
        %v2679 = vadd.f32 %v2558, %v2678
        %v2680 = vpop.f32.mrb[0].mxu0
        %2681 = vmatprep.mubr.bf16.mxu0 %v1465
        %2682 = vmatmul.mubr.bf16.gmra.mrb[0].mxu0 %v1464
        %v2683 = vpop.f32.mrb[0].mxu0
        %v2684 = vadd.f32 %v2563, %v2683
        %v2685 = vpop.f32.mrb[0].mxu0
        %v2686 = vpop.f32.mrb[0].mxu0
        %v2687 = vadd.f32 %v2566, %v2686
        %v2688 = vpop.f32.mrb[0].mxu0
        %2689 = vmatprep.mubr.bf16.mxu0 %v1482
        %2690 = vmatmul.mubr.bf16.gmra.mrb[0].mxu0 %v1481
        %v2691 = vpop.f32.mrb[0].mxu0
        %v2692 = vadd.f32 %v2571, %v2691
        %v2693 = vpop.f32.mrb[0].mxu0
        %v2694 = vpop.f32.mrb[0].mxu0
        %v2695 = vadd.f32 %v2574, %v2694
        %v2696 = vpop.f32.mrb[0].mxu0
        %2697 = vmatprep.mubr.bf16.mxu0 %v1499
        %2698 = vmatmul.mubr.bf16.gmra.mrb[0].mxu0 %v1498
        %v2699 = vpop.f32.mrb[0].mxu0
        %v2700 = vadd.f32 %v2579, %v2699
        %v2701 = vpop.f32.mrb[0].mxu0
        %v2702 = vpop.f32.mrb[0].mxu0
        %v2703 = vadd.f32 %v2582, %v2702
        %v2704 = vpop.f32.mrb[0].mxu0
        %2705 = vmatprep.mubr.bf16.mxu0 %v1516
        %2706 = vmatmul.mubr.bf16.gmra.mrb[0].mxu0 %v1515
        %v2707 = vpop.f32.mrb[0].mxu0
        %v2708 = vadd.f32 %v2587, %v2707
        %v2709 = vpop.f32.mrb[0].mxu0
        %v2710 = vpop.f32.mrb[0].mxu0
        %v2711 = vadd.f32 %v2590, %v2710
        %v2712 = vpop.f32.mrb[0].mxu0
        %2713 = vmatprep.mubr.bf16.mxu0 %v1533
        %2714 = vmatmul.mubr.bf16.gmra.mrb[0].mxu0 %v1532
        %v2715 = vpop.f32.mrb[0].mxu0
        %v2716 = vadd.f32 %v2595, %v2715
        %v2717 = vpop.f32.mrb[0].mxu0
        %v2718 = vpop.f32.mrb[0].mxu0
        %v2719 = vadd.f32 %v2598, %v2718
        %v2720 = vpop.f32.mrb[0].mxu0
        %2721 = vmatprep.mubr.bf16.mxu0 %v1550
        %2722 = vmatmul.mubr.bf16.gmra.mrb[0].mxu0 %v1549
        %v2723 = vpop.f32.mrb[0].mxu0
        %v2724 = vadd.f32 %v2603, %v2723
        %v2725 = vpop.f32.mrb[0].mxu0
        %v2726 = vpop.f32.mrb[0].mxu0
        %v2727 = vadd.f32 %v2606, %v2726
        %v2728 = vpop.f32.mrb[0].mxu0
        %2729 = vdwg.mxu0
        %2730 = vmatprep.subr.bf16.mxu0 0
        %2731 = vmatpush1.bf16.msra.mxu0 %v594
        %2732 = vmatprep.subr.bf16.mxu0 0
        %2733 = vmatpush1.bf16.msra.mxu0 0
        %2734 = vmatprep.subr.bf16.mxu0 0
        %2735 = vmatpush1.bf16.msra.mxu0 0
        %2736 = vmatprep.subr.bf16.mxu0 0
        %2737 = vmatpush1.bf16.msra.mxu0 0
        %2738 = vmatprep.subr.bf16.mxu0 0
        %2739 = vmatpush1.bf16.msra.mxu0 0
        %2740 = vmatprep.subr.bf16.mxu0 0
        %2741 = vmatpush1.bf16.msra.mxu0 0
        %2742 = vmatprep.subr.bf16.mxu0 0
        %2743 = vmatpush1.bf16.msra.mxu0 0
        %2744 = vmatprep.subr.bf16.mxu0 0
        %2745 = vmatpush1.bf16.msra.mxu0 0
        %2746 = vmatprep.subr.bf16.mxu0 0
        %2747 = vmatpush1.bf16.msra.mxu0 0
        %2748 = vmatprep.subr.bf16.mxu0 0
        %2749 = vmatpush1.bf16.msra.mxu0 0
        %2750 = vmatprep.subr.bf16.mxu0 0
        %2751 = vmatpush1.bf16.msra.mxu0 0
        %2752 = vmatprep.subr.bf16.mxu0 0
        %2753 = vmatpush1.bf16.msra.mxu0 0
        %2754 = vmatprep.subr.bf16.mxu0 0
        %2755 = vmatpush1.bf16.msra.mxu0 0
        %2756 = vmatprep.subr.bf16.mxu0 0
        %2757 = vmatpush1.bf16.msra.mxu0 0
        %2758 = vmatprep.subr.bf16.mxu0 0
        %2759 = vmatpush1.bf16.msra.mxu0 0
        %2760 = vmatprep.subr.bf16.mxu0 0
        %2761 = vmatpush1.bf16.msra.mxu0 0
        %2762 = vmatprep.mubr.bf16.mxu0 0
        %2763 = vmatmul.mubr.bf16.gmra.mrb[0].mxu0 %v1730
        %v2764 = vpop.f32.mrb[0].mxu0
        %v2765 = vadd.f32 %v2644, %v2764
        %v2766 = vpop.f32.mrb[0].mxu0
        %v2767 = vpop.f32.mrb[0].mxu0
        %v2768 = vadd.f32 %v2647, %v2767
        %v2769 = vpop.f32.mrb[0].mxu0
        %2770 = vmatprep.mubr.bf16.mxu0 0
        %2771 = vmatmul.mubr.bf16.gmra.mrb[0].mxu0 %v1733
        %v2772 = vpop.f32.mrb[0].mxu0
        %v2773 = vadd.f32 %v2652, %v2772
        %v2774 = vpop.f32.mrb[0].mxu0
        %v2775 = vpop.f32.mrb[0].mxu0
        %v2776 = vadd.f32 %v2655, %v2775
        %v2777 = vpop.f32.mrb[0].mxu0
        %2778 = vmatprep.mubr.bf16.mxu0 0
        %2779 = vmatmul.mubr.bf16.gmra.mrb[0].mxu0 %v1736
        %v2780 = vpop.f32.mrb[0].mxu0
        %v2781 = vadd.f32 %v2660, %v2780
        %v2782 = vpop.f32.mrb[0].mxu0
        %v2783 = vpop.f32.mrb[0].mxu0
        %v2784 = vadd.f32 %v2663, %v2783
        %v2785 = vpop.f32.mrb[0].mxu0
        %2786 = vmatprep.mubr.bf16.mxu0 0
        %2787 = vmatmul.mubr.bf16.gmra.mrb[0].mxu0 %v1739
        %v2788 = vpop.f32.mrb[0].mxu0
        %v2789 = vadd.f32 %v2668, %v2788
        %v2790 = vpop.f32.mrb[0].mxu0
        %v2791 = vpop.f32.mrb[0].mxu0
        %v2792 = vadd.f32 %v2671, %v2791
        %v2793 = vpop.f32.mrb[0].mxu0
        %2794 = vmatprep.mubr.bf16.mxu0 0
        %2795 = vmatmul.mubr.bf16.gmra.mrb[0].mxu0 %v1742
        %v2796 = vpop.f32.mrb[0].mxu0
        %v2797 = vadd.f32 %v2676, %v2796
        %v2798 = vpop.f32.mrb[0].mxu0
        %v2799 = vpop.f32.mrb[0].mxu0
        %v2800 = vadd.f32 %v2679, %v2799
        %v2801 = vpop.f32.mrb[0].mxu0
        %2802 = vmatprep.mubr.bf16.mxu0 0
        %2803 = vmatmul.mubr.bf16.gmra.mrb[0].mxu0 %v1745
        %v2804 = vpop.f32.mrb[0].mxu0
        %v2805 = vadd.f32 %v2684, %v2804
        %v2806 = vpop.f32.mrb[0].mxu0
        %v2807 = vpop.f32.mrb[0].mxu0
        %v2808 = vadd.f32 %v2687, %v2807
        %v2809 = vpop.f32.mrb[0].mxu0
        %2810 = vmatprep.mubr.bf16.mxu0 0
        %2811 = vmatmul.mubr.bf16.gmra.mrb[0].mxu0 %v1748
        %v2812 = vpop.f32.mrb[0].mxu0
        %v2813 = vadd.f32 %v2692, %v2812
        %v2814 = vpop.f32.mrb[0].mxu0
        %v2815 = vpop.f32.mrb[0].mxu0
        %v2816 = vadd.f32 %v2695, %v2815
        %v2817 = vpop.f32.mrb[0].mxu0
        %2818 = vmatprep.mubr.bf16.mxu0 0
        %2819 = vmatmul.mubr.bf16.gmra.mrb[0].mxu0 %v1751
        %v2820 = vpop.f32.mrb[0].mxu0
        %v2821 = vadd.f32 %v2700, %v2820
        %v2822 = vpop.f32.mrb[0].mxu0
        %v2823 = vpop.f32.mrb[0].mxu0
        %v2824 = vadd.f32 %v2703, %v2823
        %v2825 = vpop.f32.mrb[0].mxu0
        %2826 = vmatprep.mubr.bf16.mxu0 0
        %2827 = vmatmul.mubr.bf16.gmra.mrb[0].mxu0 %v1754
        %v2828 = vpop.f32.mrb[0].mxu0
        %v2829 = vadd.f32 %v2708, %v2828
        %v2830 = vpop.f32.mrb[0].mxu0
        %v2831 = vpop.f32.mrb[0].mxu0
        %v2832 = vadd.f32 %v2711, %v2831
        %v2833 = vpop.f32.mrb[0].mxu0
        %2834 = vmatprep.mubr.bf16.mxu0 0
        %2835 = vmatmul.mubr.bf16.gmra.mrb[0].mxu0 %v1757
        %v2836 = vpop.f32.mrb[0].mxu0
        %v2837 = vadd.f32 %v2716, %v2836
        %v2838 = vpop.f32.mrb[0].mxu0
        %v2839 = vpop.f32.mrb[0].mxu0
        %v2840 = vadd.f32 %v2719, %v2839
        %v2841 = vpop.f32.mrb[0].mxu0
        %2842 = vmatprep.mubr.bf16.mxu0 0
        %2843 = vmatmul.mubr.bf16.gmra.mrb[0].mxu0 %v1760
        %v2844 = vpop.f32.mrb[0].mxu0
        %v2845 = vadd.f32 %v2724, %v2844
        %v2846 = vpop.f32.mrb[0].mxu0
        %v2847 = vpop.f32.mrb[0].mxu0
        %v2848 = vadd.f32 %v2727, %v2847
        %v2849 = vpop.f32.mrb[0].mxu0
        %2850 = vdwg.mxu0
        %vm2851 = vcmask 400384
        %2852 = vst.msk [vmem:[%s179] sm:$0xff] %vm2851, %v2765
        %2853 = vst.msk [vmem:[%s179 + $0x8] sm:$0xff] %vm2851, %v2768
        %2854 = vst.msk [vmem:[%s179 + $0x10] sm:$0xff] %vm2851, %v2773
        %2855 = vst.msk [vmem:[%s179 + $0x18] sm:$0xff] %vm2851, %v2776
        %2856 = vst.msk [vmem:[%s179 + $0x20] sm:$0xff] %vm2851, %v2781
        %2857 = vst.msk [vmem:[%s179 + $0x28] sm:$0xff] %vm2851, %v2784
        %2858 = vst.msk [vmem:[%s179 + $0x30] sm:$0xff] %vm2851, %v2789
        %2859 = vst.msk [vmem:[%s179 + $0x38] sm:$0xff] %vm2851, %v2792
        %2860 = vst.msk [vmem:[%s179 + $0x40] sm:$0xff] %vm2851, %v2797
        %2861 = vst.msk [vmem:[%s179 + $0x48] sm:$0xff] %vm2851, %v2800
        %2862 = vst.msk [vmem:[%s179 + $0x50] sm:$0xff] %vm2851, %v2805
        %2863 = vst.msk [vmem:[%s179 + $0x58] sm:$0xff] %vm2851, %v2808
        %2864 = vst.msk [vmem:[%s179 + $0x60] sm:$0xff] %vm2851, %v2813
        %2865 = vst.msk [vmem:[%s179 + $0x68] sm:$0xff] %vm2851, %v2816
        %2866 = vst.msk [vmem:[%s179 + $0x70] sm:$0xff] %vm2851, %v2821
        %2867 = vst.msk [vmem:[%s179 + $0x78] sm:$0xff] %vm2851, %v2824
        %2868 = vst.msk [vmem:[%s179 + $0x80] sm:$0xff] %vm2851, %v2829
        %2869 = vst.msk [vmem:[%s179 + $0x88] sm:$0xff] %vm2851, %v2832
        %2870 = vst.msk [vmem:[%s179 + $0x90] sm:$0xff] %vm2851, %v2837
        %2871 = vst.msk [vmem:[%s179 + $0x98] sm:$0xff] %vm2851, %v2840
        %2872 = vst.msk [vmem:[%s179 + $0xa0] sm:$0xff] %vm2851, %v2845
        %2873 = vst.msk [vmem:[%s179 + $0xa8] sm:$0xff] %vm2851, %v2848
        %s2874 = sand.u32 %s87, 1
        %s2875 = sand.u32 %s87, 1
        %s2876 = smul.addr %s2875, 176
        %s2877 = scalar_lea.vmem [#allocation2], %s2876
        // Predicated region
        $region29: #{conv2d_1x1.1} parent=27 // pred_check
          %p2878 = pneg %p97
        $region30: #{conv2d_1x1.1} parent=27 // pred_check_branch
          %2880 = sbr.rel (%p2878) target = $region32
        $region31: #{conv2d_1x1.1} parent=27 // pred_region
          %s2881 = smul.u32 22, %s18
          %s2882 = ssub.s32 43, %s2881
          %p2883 = scmp.lt.s32.totalorder %s2882, 22
          %s2884 = scalar_select %p2883, %s2882, 22
          %s2885 = smul.u32 128, %s2884
          %p2886 = scmp.ne.s32.totalorder 0, %s2885
          %s2887 = smul.addr %s17, 43
          %s2888 = sadd.s32 %s2881, %s2887
          %s2889 = smul.addr %s2888, 8
          %s2890 = scalar_lea.vmem %s2, %s2889
          // Predicated region
          $region33: #{conv2d_1x1.1} parent=31 // pred_check
            %p2891 = pneg %p2886
          $region34: #{conv2d_1x1.1} parent=31 // pred_check_branch
            %2893 = sbr.rel (%p2891) target = $region36
          $region35: #{conv2d_1x1.1} parent=31 // pred_region
            // Predicated region
            $region37: #{conv2d_1x1.1} parent=35 // pred_check
              _
            $region38: #{conv2d_1x1.1} parent=35 // pred_check_branch
              %2895 = sbr.rel (0) target = $region40
            $region39: #{conv2d_1x1.1} parent=35 // pred_region
              // Predicated region
              $region59: #{conv2d_1x1.1} parent=39 // pred_check
                _
              $region60: #{conv2d_1x1.1} parent=39 // pred_check_branch
                %2987 = sbr.rel (0) target = $region62
              $region61: #{conv2d_1x1.1} parent=39 // pred_region
                %s2988 = sdiv.u32.pop %s2884, 22
                %s2989 = srem.u32.pop %s2884, 22
                // While loop
                $region63: #{conv2d_1x1.1} parent=61 // loop_pre_header
                  _
                $region64: #{conv2d_1x1.1} parent=61 // loop_header
                  %s2991 = sphi 0, %s2993
                  %p2992 = scmp.ge.s32.totalorder %s2991, %s2988
                  %s2996 = sphi 0, %s3045
                  %s2997 = sphi %s2877, %s3048
                  %s2998 = sphi %s2890, %s3049
                $region65: #{conv2d_1x1.1} parent=61 // loop_header_branch
                  %2995 = sbr.rel (%p2992) target = $region69
                $region66: #{conv2d_1x1.1} parent=61 // loop_body
                  %v2999 = vld [vmem:[%s2997] sm:$0xff]
                  %3000 = vst [vmem:[%s2998] sm:$0xff] %v2999
                  %v3001 = vld [vmem:[%s2997 + $0x8] sm:$0xff]
                  %3002 = vst [vmem:[%s2998 + $0x8] sm:$0xff] %v3001
                  %v3003 = vld [vmem:[%s2997 + $0x10] sm:$0xff]
                  %3004 = vst [vmem:[%s2998 + $0x10] sm:$0xff] %v3003
                  %v3005 = vld [vmem:[%s2997 + $0x18] sm:$0xff]
                  %3006 = vst [vmem:[%s2998 + $0x18] sm:$0xff] %v3005
                  %v3007 = vld [vmem:[%s2997 + $0x20] sm:$0xff]
                  %3008 = vst [vmem:[%s2998 + $0x20] sm:$0xff] %v3007
                  %v3009 = vld [vmem:[%s2997 + $0x28] sm:$0xff]
                  %3010 = vst [vmem:[%s2998 + $0x28] sm:$0xff] %v3009
                  %v3011 = vld [vmem:[%s2997 + $0x30] sm:$0xff]
                  %3012 = vst [vmem:[%s2998 + $0x30] sm:$0xff] %v3011
                  %v3013 = vld [vmem:[%s2997 + $0x38] sm:$0xff]
                  %3014 = vst [vmem:[%s2998 + $0x38] sm:$0xff] %v3013
                  %v3015 = vld [vmem:[%s2997 + $0x40] sm:$0xff]
                  %3016 = vst [vmem:[%s2998 + $0x40] sm:$0xff] %v3015
                  %v3017 = vld [vmem:[%s2997 + $0x48] sm:$0xff]
                  %3018 = vst [vmem:[%s2998 + $0x48] sm:$0xff] %v3017
                  %v3019 = vld [vmem:[%s2997 + $0x50] sm:$0xff]
                  %3020 = vst [vmem:[%s2998 + $0x50] sm:$0xff] %v3019
                  %v3021 = vld [vmem:[%s2997 + $0x58] sm:$0xff]
                  %3022 = vst [vmem:[%s2998 + $0x58] sm:$0xff] %v3021
                  %v3023 = vld [vmem:[%s2997 + $0x60] sm:$0xff]
                  %3024 = vst [vmem:[%s2998 + $0x60] sm:$0xff] %v3023
                  %v3025 = vld [vmem:[%s2997 + $0x68] sm:$0xff]
                  %3026 = vst [vmem:[%s2998 + $0x68] sm:$0xff] %v3025
                  %v3027 = vld [vmem:[%s2997 + $0x70] sm:$0xff]
                  %3028 = vst [vmem:[%s2998 + $0x70] sm:$0xff] %v3027
                  %v3029 = vld [vmem:[%s2997 + $0x78] sm:$0xff]
                  %3030 = vst [vmem:[%s2998 + $0x78] sm:$0xff] %v3029
                  %v3031 = vld [vmem:[%s2997 + $0x80] sm:$0xff]
                  %3032 = vst [vmem:[%s2998 + $0x80] sm:$0xff] %v3031
                  %v3033 = vld [vmem:[%s2997 + $0x88] sm:$0xff]
                  %3034 = vst [vmem:[%s2998 + $0x88] sm:$0xff] %v3033
                  %v3035 = vld [vmem:[%s2997 + $0x90] sm:$0xff]
                  %3036 = vst [vmem:[%s2998 + $0x90] sm:$0xff] %v3035
                  %v3037 = vld [vmem:[%s2997 + $0x98] sm:$0xff]
                  %3038 = vst [vmem:[%s2998 + $0x98] sm:$0xff] %v3037
                  %v3039 = vld [vmem:[%s2997 + $0xa0] sm:$0xff]
                  %3040 = vst [vmem:[%s2998 + $0xa0] sm:$0xff] %v3039
                  %v3041 = vld [vmem:[%s2997 + $0xa8] sm:$0xff]
                  %3042 = vst [vmem:[%s2998 + $0xa8] sm:$0xff] %v3041
                  %s3043 = sadd.s32 1, %s2996
                  %p3044 = scmp.ge.s32.totalorder %s3043, %s2988
                  %s3045 = scalar_select %p3044, 0, %s3043
                  %s3046 = smul.u32 %s3045, 176
                  %s3047 = smul.u32 %s3045, 176
                  %s3048 = scalar_lea.vmem %s2877, %s3046 [#allocation2]
                  %s3049 = scalar_lea.vmem %s2890, %s3047
                $region67: #{conv2d_1x1.1} parent=61 // loop_footer
                  %s2993 = sadd.s32 %s2991, 1
                $region68: #{conv2d_1x1.1} parent=61 // loop_footer_branch
                  %2990 = sbr.rel target = $region64
                $region69: #{conv2d_1x1.1} parent=61 // loop_exit
                  _
                %s3050 = sdiv.u32.pop %s2884, 22
                %s3051 = srem.u32.pop %s2884, 22
                %s3052 = smul.u32 %s3050, 22
                %s3053 = smul.u32 8, %s3052
                %s3054 = scalar_lea.vmem %s2877, %s3053 [#allocation2]
                %s3055 = smul.u32 8, %s3052
                %s3056 = scalar_lea.vmem %s2890, %s3055
                // While loop
                $region70: #{conv2d_1x1.1} parent=61 // loop_pre_header
                  _
                $region71: #{conv2d_1x1.1} parent=61 // loop_header
                  %s3058 = sphi 0, %s3060
                  %p3059 = scmp.ge.s32.totalorder %s3058, %s3051
                  %s3063 = sphi 0, %s3070
                  %s3064 = sphi %s3054, %s3073
                  %s3065 = sphi %s3056, %s3074
                $region72: #{conv2d_1x1.1} parent=61 // loop_header_branch
                  %3062 = sbr.rel (%p3059) target = $region76
                $region73: #{conv2d_1x1.1} parent=61 // loop_body
                  %v3066 = vld [vmem:[%s3064] sm:$0xff]
                  %3067 = vst [vmem:[%s3065] sm:$0xff] %v3066
                  %s3068 = sadd.s32 1, %s3063
                  %p3069 = scmp.ge.s32.totalorder %s3068, %s3051
                  %s3070 = scalar_select %p3069, 0, %s3068
                  %s3071 = smul.u32 %s3070, 8
                  %s3072 = smul.u32 %s3070, 8
                  %s3073 = scalar_lea.vmem %s3054, %s3071 [#allocation2]
                  %s3074 = scalar_lea.vmem %s3056, %s3072
                $region74: #{conv2d_1x1.1} parent=61 // loop_footer
                  %s3060 = sadd.s32 %s3058, 1
                $region75: #{conv2d_1x1.1} parent=61 // loop_footer_branch
                  %3057 = sbr.rel target = $region71
                $region76: #{conv2d_1x1.1} parent=61 // loop_exit
                  _
              $region62: #{conv2d_1x1.1} parent=39 // pred_fallthru
                _
              // Predicated region
              $region77: #{conv2d_1x1.1} parent=39 // pred_check
                _
              $region78: #{conv2d_1x1.1} parent=39 // pred_check_branch
                %3076 = sbr.rel target = $region80
              $region79: #{conv2d_1x1.1} parent=39 // pred_region
                _
              $region80: #{conv2d_1x1.1} parent=39 // pred_fallthru
                _
            $region40: #{conv2d_1x1.1} parent=35 // pred_fallthru
              _
            // Predicated region
            $region41: #{conv2d_1x1.1} parent=35 // pred_check
              _
            $region42: #{conv2d_1x1.1} parent=35 // pred_check_branch
              %2897 = sbr.rel target = $region44
            $region43: #{conv2d_1x1.1} parent=35 // pred_region
              %s2899 = sdiv.u32.pop %s2884, 22
              %s2900 = srem.u32.pop %s2884, 22
              // While loop
              $region45: #{conv2d_1x1.1} parent=43 // loop_pre_header
                _
              $region46: #{conv2d_1x1.1} parent=43 // loop_header
                %s2902 = sphi 0, %s2904
                %p2903 = scmp.ge.s32.totalorder %s2902, %s2899
                %s2907 = sphi 0, %s2956
                %s2908 = sphi %s2877, %s2959
                %s2909 = sphi %s2890, %s2960
              $region47: #{conv2d_1x1.1} parent=43 // loop_header_branch
                %2906 = sbr.rel (%p2903) target = $region51
              $region48: #{conv2d_1x1.1} parent=43 // loop_body
                %v2910 = vld [vmem:[%s2908] sm:$0xff]
                %2911 = vst [vmem:[%s2909] sm:$0xff] %v2910
                %v2912 = vld [vmem:[%s2908 + $0x8] sm:$0xff]
                %2913 = vst [vmem:[%s2909 + $0x8] sm:$0xff] %v2912
                %v2914 = vld [vmem:[%s2908 + $0x10] sm:$0xff]
                %2915 = vst [vmem:[%s2909 + $0x10] sm:$0xff] %v2914
                %v2916 = vld [vmem:[%s2908 + $0x18] sm:$0xff]
                %2917 = vst [vmem:[%s2909 + $0x18] sm:$0xff] %v2916
                %v2918 = vld [vmem:[%s2908 + $0x20] sm:$0xff]
                %2919 = vst [vmem:[%s2909 + $0x20] sm:$0xff] %v2918
                %v2920 = vld [vmem:[%s2908 + $0x28] sm:$0xff]
                %2921 = vst [vmem:[%s2909 + $0x28] sm:$0xff] %v2920
                %v2922 = vld [vmem:[%s2908 + $0x30] sm:$0xff]
                %2923 = vst [vmem:[%s2909 + $0x30] sm:$0xff] %v2922
                %v2924 = vld [vmem:[%s2908 + $0x38] sm:$0xff]
                %2925 = vst [vmem:[%s2909 + $0x38] sm:$0xff] %v2924
                %v2926 = vld [vmem:[%s2908 + $0x40] sm:$0xff]
                %2927 = vst [vmem:[%s2909 + $0x40] sm:$0xff] %v2926
                %v2928 = vld [vmem:[%s2908 + $0x48] sm:$0xff]
                %2929 = vst [vmem:[%s2909 + $0x48] sm:$0xff] %v2928
                %v2930 = vld [vmem:[%s2908 + $0x50] sm:$0xff]
                %2931 = vst [vmem:[%s2909 + $0x50] sm:$0xff] %v2930
                %v2932 = vld [vmem:[%s2908 + $0x58] sm:$0xff]
                %2933 = vst [vmem:[%s2909 + $0x58] sm:$0xff] %v2932
                %v2934 = vld [vmem:[%s2908 + $0x60] sm:$0xff]
                %2935 = vst [vmem:[%s2909 + $0x60] sm:$0xff] %v2934
                %v2936 = vld [vmem:[%s2908 + $0x68] sm:$0xff]
                %2937 = vst [vmem:[%s2909 + $0x68] sm:$0xff] %v2936
                %v2938 = vld [vmem:[%s2908 + $0x70] sm:$0xff]
                %2939 = vst [vmem:[%s2909 + $0x70] sm:$0xff] %v2938
                %v2940 = vld [vmem:[%s2908 + $0x78] sm:$0xff]
                %2941 = vst [vmem:[%s2909 + $0x78] sm:$0xff] %v2940
                %v2942 = vld [vmem:[%s2908 + $0x80] sm:$0xff]
                %2943 = vst [vmem:[%s2909 + $0x80] sm:$0xff] %v2942
                %v2944 = vld [vmem:[%s2908 + $0x88] sm:$0xff]
                %2945 = vst [vmem:[%s2909 + $0x88] sm:$0xff] %v2944
                %v2946 = vld [vmem:[%s2908 + $0x90] sm:$0xff]
                %2947 = vst [vmem:[%s2909 + $0x90] sm:$0xff] %v2946
                %v2948 = vld [vmem:[%s2908 + $0x98] sm:$0xff]
                %2949 = vst [vmem:[%s2909 + $0x98] sm:$0xff] %v2948
                %v2950 = vld [vmem:[%s2908 + $0xa0] sm:$0xff]
                %2951 = vst [vmem:[%s2909 + $0xa0] sm:$0xff] %v2950
                %v2952 = vld [vmem:[%s2908 + $0xa8] sm:$0xff]
                %2953 = vst [vmem:[%s2909 + $0xa8] sm:$0xff] %v2952
                %s2954 = sadd.s32 1, %s2907
                %p2955 = scmp.ge.s32.totalorder %s2954, %s2899
                %s2956 = scalar_select %p2955, 0, %s2954
                %s2957 = smul.u32 %s2956, 176
                %s2958 = smul.u32 %s2956, 176
                %s2959 = scalar_lea.vmem %s2877, %s2957 [#allocation2]
                %s2960 = scalar_lea.vmem %s2890, %s2958
              $region49: #{conv2d_1x1.1} parent=43 // loop_footer
                %s2904 = sadd.s32 %s2902, 1
              $region50: #{conv2d_1x1.1} parent=43 // loop_footer_branch
                %2901 = sbr.rel target = $region46
              $region51: #{conv2d_1x1.1} parent=43 // loop_exit
                _
              %s2961 = sdiv.u32.pop %s2884, 22
              %s2962 = srem.u32.pop %s2884, 22
              %s2963 = smul.u32 %s2961, 22
              %s2964 = smul.u32 8, %s2963
              %s2965 = scalar_lea.vmem %s2877, %s2964 [#allocation2]
              %s2966 = smul.u32 8, %s2963
              %s2967 = scalar_lea.vmem %s2890, %s2966
              // While loop
              $region52: #{conv2d_1x1.1} parent=43 // loop_pre_header
                _
              $region53: #{conv2d_1x1.1} parent=43 // loop_header
                %s2969 = sphi 0, %s2971
                %p2970 = scmp.ge.s32.totalorder %s2969, %s2962
                %s2974 = sphi 0, %s2981
                %s2975 = sphi %s2965, %s2984
                %s2976 = sphi %s2967, %s2985
              $region54: #{conv2d_1x1.1} parent=43 // loop_header_branch
                %2973 = sbr.rel (%p2970) target = $region58
              $region55: #{conv2d_1x1.1} parent=43 // loop_body
                %v2977 = vld [vmem:[%s2975] sm:$0xff]
                %2978 = vst [vmem:[%s2976] sm:$0xff] %v2977
                %s2979 = sadd.s32 1, %s2974
                %p2980 = scmp.ge.s32.totalorder %s2979, %s2962
                %s2981 = scalar_select %p2980, 0, %s2979
                %s2982 = smul.u32 %s2981, 8
                %s2983 = smul.u32 %s2981, 8
                %s2984 = scalar_lea.vmem %s2965, %s2982 [#allocation2]
                %s2985 = scalar_lea.vmem %s2967, %s2983
              $region56: #{conv2d_1x1.1} parent=43 // loop_footer
                %s2971 = sadd.s32 %s2969, 1
              $region57: #{conv2d_1x1.1} parent=43 // loop_footer_branch
                %2968 = sbr.rel target = $region53
              $region58: #{conv2d_1x1.1} parent=43 // loop_exit
                _
            $region44: #{conv2d_1x1.1} parent=35 // pred_fallthru
              _
          $region36: #{conv2d_1x1.1} parent=31 // pred_fallthru
            _
          %3077 = vnop
        $region32: #{conv2d_1x1.1} parent=27 // pred_fallthru
          _
      $region28: #{conv2d_1x1.1} parent=5 // pred_fallthru
        _
      %p3078 = scmp.le.s32.totalorder 2, %s8
      // Predicated region
      $region81: #{conv2d_1x1.1} parent=5 // pred_check
        %p3079 = pneg %p3078
      $region82: #{conv2d_1x1.1} parent=5 // pred_check_branch
        %3081 = sbr.rel (%p3079) target = $region84
      $region83: #{conv2d_1x1.1} parent=5 // pred_region
        %s3082 = ssub.s32 %s8, 2
        // Predicated region
        $region85: #{conv2d_1x1.1} parent=83 // pred_check
          %p3083 = pneg %p103
        $region86: #{conv2d_1x1.1} parent=83 // pred_check_branch
          %3085 = sbr.rel (%p3083) target = $region88
        $region87: #{conv2d_1x1.1} parent=83 // pred_region
          %s3086 = sand.u32 %s88, 1
          %s3087 = sand.u32 %s88, 1
          %s3088 = smul.addr %s3087, 176
          %s3089 = scalar_lea.vmem [#allocation2], %s3088
        $region88: #{conv2d_1x1.1} parent=83 // pred_fallthru
          _
      $region84: #{conv2d_1x1.1} parent=5 // pred_fallthru
        _
    $region6: #{conv2d_1x1.1} parent=1 // loop_footer
      %s12 = sadd.s32 1, %s8
    $region7: #{conv2d_1x1.1} parent=1 // loop_footer_branch
      %7 = sbr.rel target = $region3
    $region8: #{conv2d_1x1.1} parent=1 // loop_exit
      _

</llo_original>
